<compile_context>
chip_gen: v7x
topology: tpu7x:2x2x1
jax: 0.10.0
libtpu: 0.0.40
codegen_flags: <defaults>
</compile_context>

<pallas_src>
import functools

import jax
import jax.numpy as jnp
from jax.experimental import pallas as pl
from jax.experimental.pallas import tpu as pltpu


def unigcn_batched_kernel(x_ref, adj_ref, w_ref, wlin_ref, blin_ref,
                          prob_ref, logit_ref, *, n_layers, gb, n):
    """One grid step == GB graphs stacked along rows.

    x_ref    : [GB*N, C]      bf16      stacked edge features (GB graphs)
    adj_ref  : [GB*N, GB*N]   bf16/f32  block-diagonal A = B @ B^T per graph
    w_ref    : [L, C, C]      bf16      per-layer conv weights
    wlin_ref : [1, C]         f32       final Linear weight row
    blin_ref : [1, 1]         f32       final Linear bias
    prob_ref : [1, GB]        f32       sigmoid outputs, one lane-packed row
    logit_ref: [1, GB]        f32       pre-sigmoid logits (for drift checking)
    """
    h = x_ref[...]                       # [GB*N, C]
    a = adj_ref[...]                     # [GB*N, GB*N]

    for layer in range(n_layers):        # static unroll (n_layers = 2)
        # h @ W_l : bf16 MXU inputs, f32 accumulation (M=GB*N, K=C).
        hw = jnp.dot(h.astype(jnp.bfloat16), w_ref[layer],
                     preferred_element_type=jnp.float32)            # [GB*N, C] f32
        # A @ (h @ W_l): dominant matmul, block-diagonal A keeps graphs independent.
        h = jnp.dot(a, hw.astype(jnp.bfloat16),
                    preferred_element_type=jnp.float32)              # [GB*N, C] f32

    # Per-graph global max pool: rows [g*N, (g+1)*N) belong to graph g.
    # Static 2-D slices + sublane reductions, concatenated to [GB, C].
    pooled = jnp.concatenate(
        [jnp.max(h[g * n:(g + 1) * n, :], axis=0, keepdims=True) for g in range(gb)],
        axis=0)                                                       # [GB, C] f32

    # Final Linear(C, 1): contract the channel axis of all GB graphs at once,
    # producing one lane-packed [1, GB] row (single store, no per-graph 1-lane writes).
    logit = jax.lax.dot_general(
        wlin_ref[...], pooled,
        dimension_numbers=(((1,), (1,)), ((), ())),
        preferred_element_type=jnp.float32) + blin_ref[...]          # [1, GB] f32

    logit_ref[...] = logit
    prob_ref[...] = jax.nn.sigmoid(logit)


def _graphs_per_block(n_rows_per_graph, n_graphs):
    """Pick GB so GB*N fills the MXU: 128 rows on v4/v5*, 256 on v6e/v7x/unknown."""
    try:
        kind = jax.devices()[0].device_kind.lower()
    except Exception:  # pragma: no cover
        kind = ""
    target_rows = 128 if ("v4" in kind or "v5" in kind) else 256
    return max(1, min(n_graphs, target_rows // n_rows_per_graph))


def unigcn_forward(x_1, incidence_1, layer_weights, lin_w, lin_b, *, return_logits=False):
    """x_1: [G, N, C] (or [N, C]) edge features; incidence_1: [G, N, N] (or [N, N]).
    Returns sigmoid outputs [G, 1] (or [1]); with return_logits=True also the logits."""
    squeeze = False
    if x_1.ndim == 2:
        x_1, incidence_1, squeeze = x_1[None], incidence_1[None], True

    g, n, c = x_1.shape
    _, n_nodes, n_edges = incidence_1.shape
    # The reference code chain only type-checks for a square incidence matrix.
    assert n_nodes == n_edges == n, (n_nodes, n_edges, n)
    n_layers = layer_weights.shape[0]

    # ---- graph batching: GB graphs per grid step, padded to a whole number of blocks.
    gb = _graphs_per_block(n, g)
    g_pad = pl.cdiv(g, gb) * gb
    n_blocks = g_pad // gb
    if g_pad != g:
        pad = g_pad - g
        x_1 = jnp.pad(x_1, ((0, pad), (0, 0), (0, 0)))
        incidence_1 = jnp.pad(incidence_1, ((0, pad), (0, 0), (0, 0)))

    # ---- A = B @ B^T per graph, bf16 MXU inputs with f32 accumulation (0/1 entries exact).
    inc_bf16 = incidence_1.astype(jnp.bfloat16)
    adj = jnp.einsum("gne,gme->gnm", inc_bf16, inc_bf16,
                     preferred_element_type=jnp.float32)              # [G, N, N] f32 exact
    # bf16 only represents co-membership counts exactly up to 256; guard (eager wrapper).
    adj_dtype = jnp.bfloat16 if float(jnp.max(adj)) <= 256.0 else jnp.float32

    # ---- block-diagonal A per graph-block: [n_blocks, GB*N, GB*N].
    adj_g = adj.reshape(n_blocks, gb, n, n).astype(adj_dtype)
    eye = jnp.eye(gb, dtype=adj_dtype)
    adj_bd = jnp.einsum("bgnm,gh->bgnhm", adj_g, eye).reshape(n_blocks, gb * n, gb * n)

    # ---- stack GB graphs' features along rows; bf16 is exact vs. the in-kernel cast.
    x_stacked = x_1.astype(jnp.bfloat16).reshape(n_blocks, gb * n, c)

    w_bf16 = layer_weights.astype(jnp.bfloat16)
    lin_w_row = lin_w.reshape(1, c).astype(jnp.float32)
    lin_b_2d = lin_b.reshape(1, 1).astype(jnp.float32)

    kernel = functools.partial(unigcn_batched_kernel, n_layers=n_layers, gb=gb, n=n)
    probs, logits = pl.pallas_call(
        kernel,
        out_shape=(jax.ShapeDtypeStruct((n_blocks, 1, gb), jnp.float32),
                   jax.ShapeDtypeStruct((n_blocks, 1, gb), jnp.float32)),
        grid=(n_blocks,),  # one graph-block per step -> pipelined DMA + megacore sharding
        in_specs=[
            pl.BlockSpec((None, gb * n, c), lambda i: (i, 0, 0)),       # stacked x (bf16)
            pl.BlockSpec((None, gb * n, gb * n), lambda i: (i, 0, 0)),  # block-diag A
            pl.BlockSpec((n_layers, c, c), lambda i: (0, 0, 0)),        # conv weights (bf16)
            pl.BlockSpec((1, c), lambda i: (0, 0)),                     # final Linear weight
            pl.BlockSpec((1, 1), lambda i: (0, 0)),                     # final Linear bias
        ],
        out_specs=(
            pl.BlockSpec((None, 1, gb), lambda i: (i, 0, 0)),           # sigmoid, lane-packed
            pl.BlockSpec((None, 1, gb), lambda i: (i, 0, 0)),           # logits, lane-packed
        ),
        compiler_params=pltpu.CompilerParams(dimension_semantics=("parallel",)),
        # All blocks are <1 MiB here; default scoped VMEM is ample.  For large N, add a
        # trailing "arbitrary" K-reduction axis over adjacency columns (TK >= 512) with an
        # f32 VMEM accumulator and set vmem_limit_bytes explicitly (v7x: 64 MiB physical).
    )(x_stacked, adj_bd, w_bf16, lin_w_row, lin_b_2d)

    probs = probs.reshape(g_pad, 1)[:g]
    logits = logits.reshape(g_pad, 1)[:g]
    if squeeze:
        probs, logits = probs[0], logits[0]
    return (probs, logits) if return_logits else probs


def unigcn_reference(x_1, incidence_1, layer_weights, lin_w, lin_b):
    """Pure-JAX f32 reference of the original (un-refactored) forward, single graph.
    Returns (sigmoid output, pre-sigmoid logit), each shape [1]."""
    h = x_1
    for layer in range(layer_weights.shape[0]):
        x_e = incidence_1.T @ h
        h = incidence_1 @ (x_e @ layer_weights[layer])
    pooled = jnp.max(h, axis=0)
    logit = pooled @ lin_w.reshape(-1) + lin_b.reshape(-1)
    return jax.nn.sigmoid(logit), logit


if __name__ == "__main__":
    key = jax.random.PRNGKey(0)

    num_graphs = 16         # batch of hypergraphs -> 2-4 graph-blocks (parallel grid axis)
    n_nodes = n_edges = 32  # must be equal for the reference code chain (asserted)
    channels_edge = 128     # lane-aligned channel dim
    channels_node = 8       # unused by the forward pass, as in the PyTorch module
    n_layers = 2

    k_x, k_inc, k_w, k_lw, k_lb = jax.random.split(key, 5)
    x_1 = jax.random.normal(k_x, (num_graphs, n_edges, channels_edge), dtype=jnp.float32)
    incidence_1 = (
        jax.random.uniform(k_inc, (num_graphs, n_nodes, n_edges)) < 0.3
    ).astype(jnp.float32)

    # Conv weights [C, C] per layer (xavier_uniform with gain=1.414, deterministic).
    limit = (6.0 / (channels_edge + channels_edge)) ** 0.5 * 1.414
    layer_w = jax.random.uniform(
        k_w, (n_layers, channels_edge, channels_edge),
        minval=-limit, maxval=limit, dtype=jnp.float32)

    # Final torch.nn.Linear(channels_edge, 1) weight [1, C] and bias.
    lin_limit = (1.0 / channels_edge) ** 0.5
    lin_w = jax.random.uniform(
        k_lw, (1, channels_edge), minval=-lin_limit, maxval=lin_limit, dtype=jnp.float32)
    lin_b = jax.random.uniform(
        k_lb, (1, 1), minval=-lin_limit, maxval=lin_limit, dtype=jnp.float32)

    probs, logits = unigcn_forward(x_1, incidence_1, layer_w, lin_w, lin_b,
                                   return_logits=True)
    probs = jax.block_until_ready(probs)
    logits = jax.block_until_ready(logits)
    assert probs.shape == (num_graphs, 1), probs.shape
    assert logits.shape == (num_graphs, 1), logits.shape

    # Pure-JAX f32 reference (original, un-refactored math), per graph.
    ref_p, ref_l = [], []
    for gidx in range(num_graphs):
        p, l = unigcn_reference(x_1[gidx], incidence_1[gidx], layer_w, lin_w, lin_b)
        ref_p.append(p)
        ref_l.append(l)
    ref_probs = jnp.concatenate(ref_p)     # [G]
    ref_logits = jnp.concatenate(ref_l)    # [G]

    # (1) Pre-sigmoid drift (review concern): bf16 MXU inputs + reassociation vs. f32
    #     reference, measured relative to the logit dynamic range.
    scale = float(jnp.max(jnp.abs(ref_logits))) + 1.0
    max_drift = float(jnp.max(jnp.abs(logits[:, 0] - ref_logits)))
    assert max_drift <= 2.5e-2 * scale, (max_drift, scale)

    # (2) Fused epilogue exactness: kernel probs == sigmoid(kernel logits).
    assert jnp.allclose(probs[:, 0], jax.nn.sigmoid(logits[:, 0]), atol=1e-6)

    # (3) Post-sigmoid agreement with the reference (sigmoid is 1/4-Lipschitz).
    assert bool(jnp.all(jnp.abs(probs[:, 0] - ref_probs) <= 2e-2 + 0.25 * max_drift))

    print("KERNEL_OK")
</pallas_src>

<mosaic_0001>
module attributes {stable_mosaic.version = 11 : i64} {
  func.func @unigcn_batched_kernel(%arg0: i32, %arg1: memref<1x256x128xbf16, #tpu.memory_space<vmem>>, %arg2: memref<1x256x256xbf16, #tpu.memory_space<vmem>>, %arg3: memref<2x128x128xbf16, #tpu.memory_space<vmem>>, %arg4: memref<1x128xf32, #tpu.memory_space<vmem>>, %arg5: memref<1x1xf32, #tpu.memory_space<vmem>>, %arg6: memref<1x1x8xf32, #tpu.memory_space<vmem>>, %arg7: memref<1x1x8xf32, #tpu.memory_space<vmem>>) attributes {dimension_semantics = [#tpu.dimension_semantics<parallel>], iteration_bounds = array<i64: 2>, scalar_prefetch = 0 : i64, scratch_operands = 0 : i64, tpu.core_type = #tpu.core_type<tc>, window_params = [{transform_indices = @transform_0, window_bounds = array<i64: 1, 256, 128>}, {transform_indices = @transform_1, window_bounds = array<i64: 1, 256, 256>}, {pipeline_mode = #tpu.pipeline_mode<synchronous>, transform_indices = @transform_2, window_bounds = array<i64: 2, 128, 128>}, {pipeline_mode = #tpu.pipeline_mode<synchronous>, transform_indices = @transform_3, window_bounds = array<i64: 1, 128>}, {pipeline_mode = #tpu.pipeline_mode<synchronous>, transform_indices = @transform_4, window_bounds = array<i64: 1, 1>}, {transform_indices = @transform_5, window_bounds = array<i64: 1, 1, 8>}, {transform_indices = @transform_6, window_bounds = array<i64: 1, 1, 8>}]} {
    %c0 = arith.constant 0 : index
    %c0_0 = arith.constant 0 : index
    %c0_1 = arith.constant 0 : index
    %0 = vector.load %arg1[%c0, %c0_0, %c0_1] : memref<1x256x128xbf16, #tpu.memory_space<vmem>>, vector<1x256x128xbf16>
    %1 = vector.shape_cast %0 : vector<1x256x128xbf16> to vector<256x128xbf16>
    %c0_2 = arith.constant 0 : index
    %c0_3 = arith.constant 0 : index
    %c0_4 = arith.constant 0 : index
    %2 = vector.load %arg2[%c0_2, %c0_3, %c0_4] : memref<1x256x256xbf16, #tpu.memory_space<vmem>>, vector<1x256x256xbf16>
    %3 = vector.shape_cast %2 : vector<1x256x256xbf16> to vector<256x256xbf16>
    %c0_5 = arith.constant 0 : index
    %c0_6 = arith.constant 0 : index
    %c0_7 = arith.constant 0 : index
    %4 = vector.load %arg3[%c0_5, %c0_6, %c0_7] : memref<2x128x128xbf16, #tpu.memory_space<vmem>>, vector<1x128x128xbf16>
    %5 = vector.shape_cast %4 : vector<1x128x128xbf16> to vector<128x128xbf16>
    %cst = arith.constant dense<0.000000e+00> : vector<256x128xf32>
    %6 = tpu.matmul %1, %5, %cst {dimension_numbers = #tpu.dot_dimension_numbers<[1], [0], [0], [1], [0, 0, 1, 1], [], []>} : vector<256x128xbf16>, vector<128x128xbf16>, vector<256x128xf32> -> vector<256x128xf32>
    %7 = arith.truncf %6 : vector<256x128xf32> to vector<256x128xbf16>
    %cst_8 = arith.constant dense<0.000000e+00> : vector<256x128xf32>
    %8 = tpu.matmul %3, %7, %cst_8 {dimension_numbers = #tpu.dot_dimension_numbers<[1], [0], [0], [1], [0, 0, 1, 1], [], []>} : vector<256x256xbf16>, vector<256x128xbf16>, vector<256x128xf32> -> vector<256x128xf32>
    %9 = arith.truncf %8 : vector<256x128xf32> to vector<256x128xbf16>
    %c1 = arith.constant 1 : index
    %c0_9 = arith.constant 0 : index
    %c0_10 = arith.constant 0 : index
    %10 = vector.load %arg3[%c1, %c0_9, %c0_10] : memref<2x128x128xbf16, #tpu.memory_space<vmem>>, vector<1x128x128xbf16>
    %11 = vector.shape_cast %10 : vector<1x128x128xbf16> to vector<128x128xbf16>
    %cst_11 = arith.constant dense<0.000000e+00> : vector<256x128xf32>
    %12 = tpu.matmul %9, %11, %cst_11 {dimension_numbers = #tpu.dot_dimension_numbers<[1], [0], [0], [1], [0, 0, 1, 1], [], []>} : vector<256x128xbf16>, vector<128x128xbf16>, vector<256x128xf32> -> vector<256x128xf32>
    %13 = arith.truncf %12 : vector<256x128xf32> to vector<256x128xbf16>
    %cst_12 = arith.constant dense<0.000000e+00> : vector<256x128xf32>
    %14 = tpu.matmul %3, %13, %cst_12 {dimension_numbers = #tpu.dot_dimension_numbers<[1], [0], [0], [1], [0, 0, 1, 1], [], []>} : vector<256x256xbf16>, vector<256x128xbf16>, vector<256x128xf32> -> vector<256x128xf32>
    %15 = vector.extract_strided_slice %14 {offsets = [0, 0], sizes = [32, 128], strides = [1, 1]} : vector<256x128xf32> to vector<32x128xf32>
    %cst_13 = arith.constant dense<0xFF800000> : vector<128xf32>
    %16 = vector.multi_reduction <maximumf>, %15, %cst_13 [0] : vector<32x128xf32> to vector<128xf32>
    %17 = vector.shape_cast %16 : vector<128xf32> to vector<1x128xf32>
    %18 = vector.extract_strided_slice %14 {offsets = [32, 0], sizes = [32, 128], strides = [1, 1]} : vector<256x128xf32> to vector<32x128xf32>
    %cst_14 = arith.constant dense<0xFF800000> : vector<128xf32>
    %19 = vector.multi_reduction <maximumf>, %18, %cst_14 [0] : vector<32x128xf32> to vector<128xf32>
    %20 = vector.shape_cast %19 : vector<128xf32> to vector<1x128xf32>
    %21 = vector.extract_strided_slice %14 {offsets = [64, 0], sizes = [32, 128], strides = [1, 1]} : vector<256x128xf32> to vector<32x128xf32>
    %cst_15 = arith.constant dense<0xFF800000> : vector<128xf32>
    %22 = vector.multi_reduction <maximumf>, %21, %cst_15 [0] : vector<32x128xf32> to vector<128xf32>
    %23 = vector.shape_cast %22 : vector<128xf32> to vector<1x128xf32>
    %24 = vector.extract_strided_slice %14 {offsets = [96, 0], sizes = [32, 128], strides = [1, 1]} : vector<256x128xf32> to vector<32x128xf32>
    %cst_16 = arith.constant dense<0xFF800000> : vector<128xf32>
    %25 = vector.multi_reduction <maximumf>, %24, %cst_16 [0] : vector<32x128xf32> to vector<128xf32>
    %26 = vector.shape_cast %25 : vector<128xf32> to vector<1x128xf32>
    %27 = vector.extract_strided_slice %14 {offsets = [128, 0], sizes = [32, 128], strides = [1, 1]} : vector<256x128xf32> to vector<32x128xf32>
    %cst_17 = arith.constant dense<0xFF800000> : vector<128xf32>
    %28 = vector.multi_reduction <maximumf>, %27, %cst_17 [0] : vector<32x128xf32> to vector<128xf32>
    %29 = vector.shape_cast %28 : vector<128xf32> to vector<1x128xf32>
    %30 = vector.extract_strided_slice %14 {offsets = [160, 0], sizes = [32, 128], strides = [1, 1]} : vector<256x128xf32> to vector<32x128xf32>
    %cst_18 = arith.constant dense<0xFF800000> : vector<128xf32>
    %31 = vector.multi_reduction <maximumf>, %30, %cst_18 [0] : vector<32x128xf32> to vector<128xf32>
    %32 = vector.shape_cast %31 : vector<128xf32> to vector<1x128xf32>
    %33 = vector.extract_strided_slice %14 {offsets = [192, 0], sizes = [32, 128], strides = [1, 1]} : vector<256x128xf32> to vector<32x128xf32>
    %cst_19 = arith.constant dense<0xFF800000> : vector<128xf32>
    %34 = vector.multi_reduction <maximumf>, %33, %cst_19 [0] : vector<32x128xf32> to vector<128xf32>
    %35 = vector.shape_cast %34 : vector<128xf32> to vector<1x128xf32>
    %36 = vector.extract_strided_slice %14 {offsets = [224, 0], sizes = [32, 128], strides = [1, 1]} : vector<256x128xf32> to vector<32x128xf32>
    %cst_20 = arith.constant dense<0xFF800000> : vector<128xf32>
    %37 = vector.multi_reduction <maximumf>, %36, %cst_20 [0] : vector<32x128xf32> to vector<128xf32>
    %38 = vector.shape_cast %37 : vector<128xf32> to vector<1x128xf32>
    %39 = tpu.concatenate %17, %20, %23, %26, %29, %32, %35, %38 in 0 : vector<1x128xf32>, vector<1x128xf32>, vector<1x128xf32>, vector<1x128xf32>, vector<1x128xf32>, vector<1x128xf32>, vector<1x128xf32>, vector<1x128xf32> -> vector<8x128xf32>
    %c0_21 = arith.constant 0 : index
    %c0_22 = arith.constant 0 : index
    %40 = vector.load %arg4[%c0_21, %c0_22] : memref<1x128xf32, #tpu.memory_space<vmem>>, vector<1x128xf32>
    %cst_23 = arith.constant dense<0.000000e+00> : vector<1x8xf32>
    %41 = tpu.matmul %40, %39, %cst_23 {dimension_numbers = #tpu.dot_dimension_numbers<[1], [1], [0], [0], [0, 0, 1, 0], [], []>} : vector<1x128xf32>, vector<8x128xf32>, vector<1x8xf32> -> vector<1x8xf32>
    %c0_24 = arith.constant 0 : index
    %c0_25 = arith.constant 0 : index
    %42 = vector.load %arg5[%c0_24, %c0_25] : memref<1x1xf32, #tpu.memory_space<vmem>>, vector<1x1xf32>
    %43 = vector.broadcast %42 : vector<1x1xf32> to vector<1x8xf32>
    %44 = arith.addf %41, %43 : vector<1x8xf32>
    %c0_26 = arith.constant 0 : index
    %c0_27 = arith.constant 0 : index
    %c0_28 = arith.constant 0 : index
    %45 = vector.load %arg7[%c0_26, %c0_27, %c0_28] : memref<1x1x8xf32, #tpu.memory_space<vmem>>, vector<1x1x8xf32>
    %46 = vector.shape_cast %45 : vector<1x1x8xf32> to vector<1x8xf32>
    %47 = vector.shape_cast %44 : vector<1x8xf32> to vector<1x1x8xf32>
    tpu.vector_store %arg7[%c0_26, %c0_27, %c0_28], %47 {strides = array<i32>} : memref<1x1x8xf32, #tpu.memory_space<vmem>>, vector<1x1x8xf32>,
    %48 = arith.negf %44 : vector<1x8xf32>
    %49 = math.exp %48 : vector<1x8xf32>
    %cst_29 = arith.constant 1.000000e+00 : f32
    %50 = vector.broadcast %cst_29 : f32 to vector<1x8xf32>
    %51 = arith.addf %50, %49 : vector<1x8xf32>
    %52 = arith.divf %50, %51 : vector<1x8xf32>
    %c0_30 = arith.constant 0 : index
    %c0_31 = arith.constant 0 : index
    %c0_32 = arith.constant 0 : index
    %53 = vector.load %arg6[%c0_30, %c0_31, %c0_32] : memref<1x1x8xf32, #tpu.memory_space<vmem>>, vector<1x1x8xf32>
    %54 = vector.shape_cast %53 : vector<1x1x8xf32> to vector<1x8xf32>
    %55 = vector.shape_cast %52 : vector<1x8xf32> to vector<1x1x8xf32>
    tpu.vector_store %arg6[%c0_30, %c0_31, %c0_32], %55 {strides = array<i32>} : memref<1x1x8xf32, #tpu.memory_space<vmem>>, vector<1x1x8xf32>,
    return
  }
  func.func @transform_0(%arg0: i32) -> (i32, i32, i32) {
    %c0_i32 = arith.constant 0 : i32
    %c0_i32_0 = arith.constant 0 : i32
    %c0_i32_1 = arith.constant 0 : i32
    return %arg0, %c0_i32, %c0_i32_0 : i32, i32, i32
  }
  func.func @transform_1(%arg0: i32) -> (i32, i32, i32) {
    %c0_i32 = arith.constant 0 : i32
    %c0_i32_0 = arith.constant 0 : i32
    %c0_i32_1 = arith.constant 0 : i32
    return %arg0, %c0_i32, %c0_i32_0 : i32, i32, i32
  }
  func.func @transform_2(%arg0: i32) -> (i32, i32, i32) {
    %c0_i32 = arith.constant 0 : i32
    %c0_i32_0 = arith.constant 0 : i32
    %c0_i32_1 = arith.constant 0 : i32
    %c0_i32_2 = arith.constant 0 : i32
    return %c0_i32, %c0_i32_0, %c0_i32_1 : i32, i32, i32
  }
  func.func @transform_3(%arg0: i32) -> (i32, i32) {
    %c0_i32 = arith.constant 0 : i32
    %c0_i32_0 = arith.constant 0 : i32
    %c0_i32_1 = arith.constant 0 : i32
    return %c0_i32, %c0_i32_0 : i32, i32
  }
  func.func @transform_4(%arg0: i32) -> (i32, i32) {
    %c0_i32 = arith.constant 0 : i32
    %c0_i32_0 = arith.constant 0 : i32
    %c0_i32_1 = arith.constant 0 : i32
    return %c0_i32, %c0_i32_0 : i32, i32
  }
  func.func @transform_5(%arg0: i32) -> (i32, i32, i32) {
    %c0_i32 = arith.constant 0 : i32
    %c0_i32_0 = arith.constant 0 : i32
    %c0_i32_1 = arith.constant 0 : i32
    return %arg0, %c0_i32, %c0_i32_0 : i32, i32, i32
  }
  func.func @transform_6(%arg0: i32) -> (i32, i32, i32) {
    %c0_i32 = arith.constant 0 : i32
    %c0_i32_0 = arith.constant 0 : i32
    %c0_i32_1 = arith.constant 0 : i32
    return %arg0, %c0_i32, %c0_i32_0 : i32, i32, i32
  }
}

</mosaic_0001>

<llo_original>
// kernel: tpu_custom_call.1
$region0: #{tpu_custom_call.1}
  #allocation0 [shape = 'u32[]', space=smem, size = 0x4, offset = 0x4, fixed_abs, tag = 'smem constant byte address 0x4 - core index']
  #allocation1 [shape = 'u32[144,128]{1,0:T(1,128)}', space=vmem, size = 0x12000, scoped, tag = 'internal scratch']
  #allocation2 [shape = 'f32[1,1]{1,0:T(1,128)S(1)}', space=vmem, size = 0x200, scoped, tag = 'scoped memory for tpu_custom_call.1']
  %s0 = inlined_call_operand.hbm [shape: bf16[2,256,128], index: 0, kind: input, shape index: {}]
  %s1 = inlined_call_operand.hbm [shape: bf16[2,256,256], index: 1, kind: input, shape index: {}]
  %s2 = inlined_call_operand.hbm [shape: bf16[2,128,128], index: 2, kind: input, shape index: {}]
  %s3 = inlined_call_operand.vmem [shape: f32[1,128], index: 3, kind: input, shape index: {}]
  %s4 = inlined_call_operand.<no memory space> [shape: f32[1,1], index: 4, kind: input, shape index: {}]
  %s5 = inlined_call_operand.hbm [shape: f32[2,1,8], index: 5, kind: output, shape index: {0}]
  %s6 = inlined_call_operand.hbm [shape: f32[2,1,8], index: 6, kind: output, shape index: {1}]
  %7 = xla_tuple %s5, %s6
  %s8 = sld [smem:[#allocation0]]
  $region73: #{tpu_custom_call.1} parent=0
    _
  %s10 = ssub.s32 1, %s8
  %s11 = scalar_select 0, %s10, %s8
  %v12 = vstv %s4
  %13 = vst [vmem:[#allocation2] sm:$0x1] %v12
  $region1: #{tpu_custom_call.1} parent=0
    #allocation3 [shape = 'u8[131072]{0}', space=vmem, size = 0x20000, scoped, tag = 'input window, operand 0']
    #allocation4 [shape = 's32[2]{0}', space=sflag, size = 0x8, scoped, tag = 'scoped memory for tpu_custom_call.1']
    #allocation5 [shape = 's32[2]{0}', space=sflag, size = 0x8, scoped, tag = 'scoped memory for tpu_custom_call.1']
    #allocation6 [shape = 'u8[262144]{0}', space=vmem, size = 0x40000, scoped, tag = 'input window, operand 1']
    #allocation7 [shape = 's32[2]{0}', space=sflag, size = 0x8, scoped, tag = 'scoped memory for tpu_custom_call.1']
    #allocation8 [shape = 'u8[65536]{0}', space=vmem, size = 0x10000, scoped, tag = 'input window, operand 2, single buffered']
    #allocation9 [shape = 'u8[1024]{0}', space=vmem, size = 0x400, scoped, tag = 'output window, operand 0']
    #allocation10 [shape = 'u8[1024]{0}', space=vmem, size = 0x400, scoped, tag = 'output window, operand 1']
    #allocation11 [shape = 's32[2]{0}', space=sflag, size = 0x8, scoped, tag = 'scoped memory for tpu_custom_call.1']
    %14 = vsyncpa [#allocation4], 0
    %s15 = scalar_lea.sflag [#allocation4], 1
    %16 = vsyncpa %s15, 0
    %17 = vsyncpa [#allocation7], 0
    %s18 = scalar_lea.sflag [#allocation7], 1
    %19 = vsyncpa %s18, 0
    %20 = vsyncpa [#allocation5], 0
    %s21 = scalar_lea.sflag [#allocation5], 1
    %22 = vsyncpa %s21, 0
    %23 = vsyncpa [#allocation11], 0
    %s24 = scalar_lea.sflag [#allocation11], 1
    %25 = vsyncpa %s24, 0
    loop: start=0, step=1, limit=4
    $region2: #{tpu_custom_call.1} parent=1 // loop_pre_header
      _
    $region3: #{tpu_custom_call.1} parent=1 // loop_header
      %s27 = sphi 0, %s31
      %p28 = scmp.ge.s32.totalorder %s27, 4
      %s37 = sphi 0, %s39
      %s40 = sphi 0, %s37
      %s41 = sphi 0, %s40
      %s57 = sphi 0, %s41
      %s63 = sphi 0, %s65
      %s66 = sphi 0, %s63
      %s67 = sphi 0, %s66
      %s83 = sphi 0, %s67
      %s87 = sphi 0, %s87
      %s89 = sphi 0, %s87
      %s90 = sphi 0, %s89
      %s104 = sphi 0, %s90
      %s108 = sphi 0, %s108
      %s110 = sphi 0, %s108
      %s111 = sphi 0, %s110
      %s125 = sphi 0, %s111
      %s129 = sphi 0, %s129
      %s131 = sphi 0, %s129
      %s132 = sphi 0, %s131
      %s146 = sphi 0, %s132
      %s152 = sphi 0, %s154
      %s155 = sphi 0, %s152
      %s156 = sphi 0, %s155
      %s172 = sphi 0, %s156
      %s178 = sphi 0, %s180
      %s181 = sphi 0, %s178
      %s182 = sphi 0, %s181
      %s198 = sphi 0, %s182
    $region4: #{tpu_custom_call.1} parent=1 // loop_header_branch
      %30 = sbr.rel (%p28) target = $region8
    $region5: #{tpu_custom_call.1} parent=1 // loop_body
      %s32 = ssub.s32 %s27, 1
      %s33 = ssub.s32 %s27, 2
      %s34 = sadd.s32 %s27, 1
      %s35 = ssub.s32 %s27, %s34
      %p36 = scmp.eq.s32.totalorder %s35, 0
      %s38 = sadd.s32 %s37, 1
      %s39 = scalar_select %p36, %s37, %s38
      %p42 = pneg %p36
      %p43 = scmp.eq.s32.totalorder %s27, 1
      %p44 = por %p42, %p43
      %p45 = scmp.ne.s32.totalorder %s37, %s40
      %p46 = scmp.eq.s32.totalorder %s27, 0
      %p47 = por %p45, %p46
      %p48 = scmp.ne.s32.totalorder %s37, %s40
      %p49 = scmp.eq.s32.totalorder %s32, 1
      %p50 = por %p48, %p49
      %p51 = scmp.ne.s32.totalorder %s40, %s41
      %p52 = scmp.eq.s32.totalorder %s32, 0
      %p53 = por %p51, %p52
      %p54 = scmp.ne.s32.totalorder %s40, %s41
      %p55 = scmp.eq.s32.totalorder %s33, 1
      %p56 = por %p54, %p55
      %p58 = scmp.ne.s32.totalorder %s41, %s57
      %p59 = scmp.eq.s32.totalorder %s33, 0
      %p60 = por %p58, %p59
      %s61 = ssub.s32 %s27, %s34
      %p62 = scmp.eq.s32.totalorder %s61, 0
      %s64 = sadd.s32 %s63, 1
      %s65 = scalar_select %p62, %s63, %s64
      %p68 = pneg %p62
      %p69 = scmp.eq.s32.totalorder %s27, 1
      %p70 = por %p68, %p69
      %p71 = scmp.ne.s32.totalorder %s63, %s66
      %p72 = scmp.eq.s32.totalorder %s27, 0
      %p73 = por %p71, %p72
      %p74 = scmp.ne.s32.totalorder %s63, %s66
      %p75 = scmp.eq.s32.totalorder %s32, 1
      %p76 = por %p74, %p75
      %p77 = scmp.ne.s32.totalorder %s66, %s67
      %p78 = scmp.eq.s32.totalorder %s32, 0
      %p79 = por %p77, %p78
      %p80 = scmp.ne.s32.totalorder %s66, %s67
      %p81 = scmp.eq.s32.totalorder %s33, 1
      %p82 = por %p80, %p81
      %p84 = scmp.ne.s32.totalorder %s67, %s83
      %p85 = scmp.eq.s32.totalorder %s33, 0
      %p86 = por %p84, %p85
      %s88 = sadd.s32 %s87, 1
      %p91 = scmp.eq.s32.totalorder %s27, 1
      %p92 = scmp.ne.s32.totalorder %s87, %s89
      %p93 = scmp.eq.s32.totalorder %s27, 0
      %p94 = por %p92, %p93
      %p95 = scmp.ne.s32.totalorder %s87, %s89
      %p96 = scmp.eq.s32.totalorder %s32, 1
      %p97 = por %p95, %p96
      %p98 = scmp.ne.s32.totalorder %s89, %s90
      %p99 = scmp.eq.s32.totalorder %s32, 0
      %p100 = por %p98, %p99
      %p101 = scmp.ne.s32.totalorder %s89, %s90
      %p102 = scmp.eq.s32.totalorder %s33, 1
      %p103 = por %p101, %p102
      %p105 = scmp.ne.s32.totalorder %s90, %s104
      %p106 = scmp.eq.s32.totalorder %s33, 0
      %p107 = por %p105, %p106
      %s109 = sadd.s32 %s108, 1
      %p112 = scmp.eq.s32.totalorder %s27, 1
      %p113 = scmp.ne.s32.totalorder %s108, %s110
      %p114 = scmp.eq.s32.totalorder %s27, 0
      %p115 = por %p113, %p114
      %p116 = scmp.ne.s32.totalorder %s108, %s110
      %p117 = scmp.eq.s32.totalorder %s32, 1
      %p118 = por %p116, %p117
      %p119 = scmp.ne.s32.totalorder %s110, %s111
      %p120 = scmp.eq.s32.totalorder %s32, 0
      %p121 = por %p119, %p120
      %p122 = scmp.ne.s32.totalorder %s110, %s111
      %p123 = scmp.eq.s32.totalorder %s33, 1
      %p124 = por %p122, %p123
      %p126 = scmp.ne.s32.totalorder %s111, %s125
      %p127 = scmp.eq.s32.totalorder %s33, 0
      %p128 = por %p126, %p127
      %s130 = sadd.s32 %s129, 1
      %p133 = scmp.eq.s32.totalorder %s27, 1
      %p134 = scmp.ne.s32.totalorder %s129, %s131
      %p135 = scmp.eq.s32.totalorder %s27, 0
      %p136 = por %p134, %p135
      %p137 = scmp.ne.s32.totalorder %s129, %s131
      %p138 = scmp.eq.s32.totalorder %s32, 1
      %p139 = por %p137, %p138
      %p140 = scmp.ne.s32.totalorder %s131, %s132
      %p141 = scmp.eq.s32.totalorder %s32, 0
      %p142 = por %p140, %p141
      %p143 = scmp.ne.s32.totalorder %s131, %s132
      %p144 = scmp.eq.s32.totalorder %s33, 1
      %p145 = por %p143, %p144
      %p147 = scmp.ne.s32.totalorder %s132, %s146
      %p148 = scmp.eq.s32.totalorder %s33, 0
      %p149 = por %p147, %p148
      %s150 = ssub.s32 %s27, %s34
      %p151 = scmp.eq.s32.totalorder %s150, 0
      %s153 = sadd.s32 %s152, 1
      %s154 = scalar_select %p151, %s152, %s153
      %p157 = pneg %p151
      %p158 = scmp.eq.s32.totalorder %s27, 1
      %p159 = por %p157, %p158
      %p160 = scmp.ne.s32.totalorder %s152, %s155
      %p161 = scmp.eq.s32.totalorder %s27, 0
      %p162 = por %p160, %p161
      %p163 = scmp.ne.s32.totalorder %s152, %s155
      %p164 = scmp.eq.s32.totalorder %s32, 1
      %p165 = por %p163, %p164
      %p166 = scmp.ne.s32.totalorder %s155, %s156
      %p167 = scmp.eq.s32.totalorder %s32, 0
      %p168 = por %p166, %p167
      %p169 = scmp.ne.s32.totalorder %s155, %s156
      %p170 = scmp.eq.s32.totalorder %s33, 1
      %p171 = por %p169, %p170
      %p173 = scmp.ne.s32.totalorder %s156, %s172
      %p174 = scmp.eq.s32.totalorder %s33, 0
      %p175 = por %p173, %p174
      %s176 = ssub.s32 %s27, %s34
      %p177 = scmp.eq.s32.totalorder %s176, 0
      %s179 = sadd.s32 %s178, 1
      %s180 = scalar_select %p177, %s178, %s179
      %p183 = pneg %p177
      %p184 = scmp.eq.s32.totalorder %s27, 1
      %p185 = por %p183, %p184
      %p186 = scmp.ne.s32.totalorder %s178, %s181
      %p187 = scmp.eq.s32.totalorder %s27, 0
      %p188 = por %p186, %p187
      %p189 = scmp.ne.s32.totalorder %s178, %s181
      %p190 = scmp.eq.s32.totalorder %s32, 1
      %p191 = por %p189, %p190
      %p192 = scmp.ne.s32.totalorder %s181, %s182
      %p193 = scmp.eq.s32.totalorder %s32, 0
      %p194 = por %p192, %p193
      %p195 = scmp.ne.s32.totalorder %s181, %s182
      %p196 = scmp.eq.s32.totalorder %s33, 1
      %p197 = por %p195, %p196
      %p199 = scmp.ne.s32.totalorder %s182, %s198
      %p200 = scmp.eq.s32.totalorder %s33, 0
      %p201 = por %p199, %p200
      %p202 = scmp.le.s32.totalorder 1, %s27
      %p203 = scmp.lt.s32.totalorder %s27, 3
      %p204 = pnand %p202, %p203
      %p205 = pneg %p204
      // Predicated region
      $region9: #{tpu_custom_call.1} parent=5 // pred_check
        _
      $region10: #{tpu_custom_call.1} parent=5 // pred_check_branch
        %207 = sbr.rel (%p204) target = $region12
      $region11: #{tpu_custom_call.1} parent=5 // pred_region
        %s208 = ssub.s32 %s27, 1
        // Predicated region
        $region13: #{tpu_custom_call.1} parent=11 // pred_check
          %p209 = pneg %p100
        $region14: #{tpu_custom_call.1} parent=11 // pred_check_branch
          %211 = sbr.rel (%p209) target = $region16
        $region15: #{tpu_custom_call.1} parent=11 // pred_region
          %s213 = ssub.s32 2048, 2048
          %214 = vsyncadd [#allocation7], %s213
          %s215 = sshll.u32 [#allocation8], 4
          %s216 = int_to_ptr.vmem [resolvable:$true] %s215
          %221 = dma.hbm_to_vmem [thread:$0]  %s2, 2048, %s216, [#allocation7], 64, 64, 4
        $region16: #{tpu_custom_call.1} parent=11 // pred_fallthru
          _
        // Predicated region
        $region17: #{tpu_custom_call.1} parent=11 // pred_check
          %p222 = pneg %p121
        $region18: #{tpu_custom_call.1} parent=11 // pred_check_branch
          %224 = sbr.rel (%p222) target = $region20
        $region19: #{tpu_custom_call.1} parent=11 // pred_region
          _
        $region20: #{tpu_custom_call.1} parent=11 // pred_fallthru
          _
        // Predicated region
        $region21: #{tpu_custom_call.1} parent=11 // pred_check
          %p225 = pneg %p142
        $region22: #{tpu_custom_call.1} parent=11 // pred_check_branch
          %227 = sbr.rel (%p225) target = $region24
        $region23: #{tpu_custom_call.1} parent=11 // pred_region
          _
        $region24: #{tpu_custom_call.1} parent=11 // pred_fallthru
          _
      $region12: #{tpu_custom_call.1} parent=5 // pred_fallthru
        _
      %p228 = scmp.lt.s32.totalorder %s27, 2
      // Predicated region
      $region25: #{tpu_custom_call.1} parent=5 // pred_check
        %p229 = pneg %p228
      $region26: #{tpu_custom_call.1} parent=5 // pred_check_branch
        %231 = sbr.rel (%p229) target = $region28
      $region27: #{tpu_custom_call.1} parent=5 // pred_region
        // Predicated region
        $region29: #{tpu_custom_call.1} parent=27 // pred_check
          %p232 = pneg %p47
        $region30: #{tpu_custom_call.1} parent=27 // pred_check_branch
          %234 = sbr.rel (%p232) target = $region32
        $region31: #{tpu_custom_call.1} parent=27 // pred_region
          %s235 = sand.u32 %s37, 1
          %s236 = scalar_lea.sflag [#allocation4], %s235
          %s237 = sand.u32 %s37, 1
          %s238 = smul.addr %s237, 128
          %s239 = scalar_lea.vmem [#allocation3], %s238
          %s241 = ssub.s32 2048, 2048
          %242 = vsyncadd %s236, %s241
          %s243 = smul.addr %s27, 32
          %s244 = smul.addr %s243, 64
          %s245 = scalar_lea.hbm %s0, %s244
          %s246 = sshll.u32 %s239, 4
          %s247 = int_to_ptr.vmem [resolvable:$true] %s246
          %252 = dma.hbm_to_vmem [thread:$0]  %s245, 2048, %s247, %s236, 64, 64, 4
        $region32: #{tpu_custom_call.1} parent=27 // pred_fallthru
          _
        // Predicated region
        $region33: #{tpu_custom_call.1} parent=27 // pred_check
          %p253 = pneg %p73
        $region34: #{tpu_custom_call.1} parent=27 // pred_check_branch
          %255 = sbr.rel (%p253) target = $region36
        $region35: #{tpu_custom_call.1} parent=27 // pred_region
          %s256 = sand.u32 %s27, 1
          %s257 = scalar_lea.sflag [#allocation7], %s256
          %s258 = sand.u32 %s63, 1
          %s259 = smul.addr %s258, 256
          %s260 = scalar_lea.vmem [#allocation6], %s259
          %s262 = ssub.s32 4096, 4096
          %263 = vsyncadd %s257, %s262
          %s264 = smul.addr %s27, 64
          %s265 = smul.addr %s264, 64
          %s266 = scalar_lea.hbm %s1, %s265
          %s267 = sshll.u32 %s260, 4
          %s268 = int_to_ptr.vmem [resolvable:$true] %s267
          %273 = dma.hbm_to_vmem [thread:$0]  %s266, 4096, %s268, %s257, 128, 128, 8
        $region36: #{tpu_custom_call.1} parent=27 // pred_fallthru
          _
      $region28: #{tpu_custom_call.1} parent=5 // pred_fallthru
        _
      %p274 = scmp.le.s32.totalorder 1, %s27
      %p275 = scmp.lt.s32.totalorder %s27, 3
      %p276 = pnand %p274, %p275
      %p277 = pneg %p276
      // Predicated region
      $region37: #{tpu_custom_call.1} parent=5 // pred_check
        _
      $region38: #{tpu_custom_call.1} parent=5 // pred_check_branch
        %279 = sbr.rel (%p276) target = $region40
      $region39: #{tpu_custom_call.1} parent=5 // pred_region
        %s280 = ssub.s32 %s27, 1
        %s281 = sand.u32 %s40, 1
        %s282 = scalar_lea.sflag [#allocation4], %s281
        %s283 = sand.u32 %s40, 1
        %s284 = smul.addr %s283, 128
        %s285 = scalar_lea.vmem [#allocation3], %s284
        // Predicated region
        $region41: #{tpu_custom_call.1} parent=39 // pred_check
          %p286 = pneg %p53
        $region42: #{tpu_custom_call.1} parent=39 // pred_check_branch
          %288 = sbr.rel (%p286) target = $region44
        $region43: #{tpu_custom_call.1} parent=39 // pred_region
          %289 = dma.done %s282, 2048
        $region44: #{tpu_custom_call.1} parent=39 // pred_fallthru
          _
        %s290 = sand.u32 %s32, 1
        %s291 = scalar_lea.sflag [#allocation7], %s290
        %s292 = sand.u32 %s66, 1
        %s293 = smul.addr %s292, 256
        %s294 = scalar_lea.vmem [#allocation6], %s293
        // Predicated region
        $region45: #{tpu_custom_call.1} parent=39 // pred_check
          %p295 = pneg %p79
        $region46: #{tpu_custom_call.1} parent=39 // pred_check_branch
          %297 = sbr.rel (%p295) target = $region48
        $region47: #{tpu_custom_call.1} parent=39 // pred_region
          %298 = dma.done %s291, 4096
        $region48: #{tpu_custom_call.1} parent=39 // pred_fallthru
          _
        // Predicated region
        $region49: #{tpu_custom_call.1} parent=39 // pred_check
          %p299 = pneg %p100
        $region50: #{tpu_custom_call.1} parent=39 // pred_check_branch
          %301 = sbr.rel (%p299) target = $region52
        $region51: #{tpu_custom_call.1} parent=39 // pred_region
          %302 = dma.done [#allocation7], 2048
        $region52: #{tpu_custom_call.1} parent=39 // pred_fallthru
          _
        %s303 = sand.u32 %s40, 1
        %s304 = scalar_lea.sflag [#allocation4], %s303
        %s305 = sand.u32 %s40, 1
        %s306 = smul.addr %s305, 128
        %s307 = scalar_lea.vmem [#allocation3], %s306
        %p308 = pneg %p53
        %p309 = pneg %p50
        %s310 = sand.u32 %s32, 1
        %s311 = scalar_lea.sflag [#allocation7], %s310
        %s312 = sand.u32 %s66, 1
        %s313 = smul.addr %s312, 256
        %s314 = scalar_lea.vmem [#allocation6], %s313
        %p315 = pneg %p79
        %p316 = pneg %p76
        %p317 = pneg %p100
        %p318 = pneg %p97
        %p319 = pneg %p121
        %p320 = pneg %p118
        %p321 = pneg %p142
        %p322 = pneg %p139
        %p323 = pneg %p168
        %p324 = pneg %p165
        %s325 = sand.u32 %s155, 1
        %s326 = scalar_lea.sflag [#allocation5], %s325
        %s327 = sand.u32 %s155, 1
        %s328 = scalar_lea.vmem [#allocation9], %s327
        %p329 = pneg %p194
        %p330 = pneg %p191
        %s331 = sand.u32 %s181, 1
        %s332 = scalar_lea.sflag [#allocation11], %s331
        %s333 = sand.u32 %s181, 1
        %s334 = scalar_lea.vmem [#allocation10], %s333
        %v336 = vld [vmem:[%s285] sm:$0xf]
        %v337 = vld [vmem:[%s285 + $0x4] sm:$0xf]
        %v338 = vld [vmem:[%s285 + $0x8] sm:$0xf]
        %v339 = vld [vmem:[%s285 + $0xc] sm:$0xf]
        %v340 = vld [vmem:[%s285 + $0x10] sm:$0xf]
        %v341 = vld [vmem:[%s285 + $0x14] sm:$0xf]
        %v342 = vld [vmem:[%s285 + $0x18] sm:$0xf]
        %v343 = vld [vmem:[%s285 + $0x1c] sm:$0xf]
        %v344 = vld [vmem:[%s285 + $0x20] sm:$0xf]
        %v345 = vld [vmem:[%s285 + $0x24] sm:$0xf]
        %v346 = vld [vmem:[%s285 + $0x28] sm:$0xf]
        %v347 = vld [vmem:[%s285 + $0x2c] sm:$0xf]
        %v348 = vld [vmem:[%s285 + $0x30] sm:$0xf]
        %v349 = vld [vmem:[%s285 + $0x34] sm:$0xf]
        %v350 = vld [vmem:[%s285 + $0x38] sm:$0xf]
        %v351 = vld [vmem:[%s285 + $0x3c] sm:$0xf]
        %v352 = vld [vmem:[%s285 + $0x40] sm:$0xf]
        %v353 = vld [vmem:[%s285 + $0x44] sm:$0xf]
        %v354 = vld [vmem:[%s285 + $0x48] sm:$0xf]
        %v355 = vld [vmem:[%s285 + $0x4c] sm:$0xf]
        %v356 = vld [vmem:[%s285 + $0x50] sm:$0xf]
        %v357 = vld [vmem:[%s285 + $0x54] sm:$0xf]
        %v358 = vld [vmem:[%s285 + $0x58] sm:$0xf]
        %v359 = vld [vmem:[%s285 + $0x5c] sm:$0xf]
        %v360 = vld [vmem:[%s285 + $0x60] sm:$0xf]
        %v361 = vld [vmem:[%s285 + $0x64] sm:$0xf]
        %v362 = vld [vmem:[%s285 + $0x68] sm:$0xf]
        %v363 = vld [vmem:[%s285 + $0x6c] sm:$0xf]
        %v364 = vld [vmem:[%s285 + $0x70] sm:$0xf]
        %v365 = vld [vmem:[%s285 + $0x74] sm:$0xf]
        %v366 = vld [vmem:[%s285 + $0x78] sm:$0xf]
        %v367 = vld [vmem:[%s285 + $0x7c] sm:$0xf]
        %v368 = vld [vmem:[%s294] sm:$0xff]
        %v369 = vld [vmem:[%s294 + $0x8] sm:$0xff]
        %v370 = vld [vmem:[%s294 + $0x10] sm:$0xff]
        %v371 = vld [vmem:[%s294 + $0x18] sm:$0xff]
        %v372 = vld [vmem:[%s294 + $0x20] sm:$0xff]
        %v373 = vld [vmem:[%s294 + $0x28] sm:$0xff]
        %v374 = vld [vmem:[%s294 + $0x30] sm:$0xff]
        %v375 = vld [vmem:[%s294 + $0x38] sm:$0xff]
        %v376 = vld [vmem:[%s294 + $0x40] sm:$0xff]
        %v377 = vld [vmem:[%s294 + $0x48] sm:$0xff]
        %v378 = vld [vmem:[%s294 + $0x50] sm:$0xff]
        %v379 = vld [vmem:[%s294 + $0x58] sm:$0xff]
        %v380 = vld [vmem:[%s294 + $0x60] sm:$0xff]
        %v381 = vld [vmem:[%s294 + $0x68] sm:$0xff]
        %v382 = vld [vmem:[%s294 + $0x70] sm:$0xff]
        %v383 = vld [vmem:[%s294 + $0x78] sm:$0xff]
        %v384 = vld [vmem:[%s294 + $0x80] sm:$0xff]
        %v385 = vld [vmem:[%s294 + $0x88] sm:$0xff]
        %v386 = vld [vmem:[%s294 + $0x90] sm:$0xff]
        %v387 = vld [vmem:[%s294 + $0x98] sm:$0xff]
        %v388 = vld [vmem:[%s294 + $0xa0] sm:$0xff]
        %v389 = vld [vmem:[%s294 + $0xa8] sm:$0xff]
        %v390 = vld [vmem:[%s294 + $0xb0] sm:$0xff]
        %v391 = vld [vmem:[%s294 + $0xb8] sm:$0xff]
        %v392 = vld [vmem:[%s294 + $0xc0] sm:$0xff]
        %v393 = vld [vmem:[%s294 + $0xc8] sm:$0xff]
        %v394 = vld [vmem:[%s294 + $0xd0] sm:$0xff]
        %v395 = vld [vmem:[%s294 + $0xd8] sm:$0xff]
        %v396 = vld [vmem:[%s294 + $0xe0] sm:$0xff]
        %v397 = vld [vmem:[%s294 + $0xe8] sm:$0xff]
        %v398 = vld [vmem:[%s294 + $0xf0] sm:$0xff]
        %v399 = vld [vmem:[%s294 + $0xf8] sm:$0xff]
        %v400 = vld [vmem:[#allocation8] sm:$0xf]
        %v401 = vld [vmem:[#allocation8 + $0x4] sm:$0xf]
        %v402 = vld [vmem:[#allocation8 + $0x8] sm:$0xf]
        %v403 = vld [vmem:[#allocation8 + $0xc] sm:$0xf]
        %v404 = vld [vmem:[#allocation8 + $0x10] sm:$0xf]
        %v405 = vld [vmem:[#allocation8 + $0x14] sm:$0xf]
        %v406 = vld [vmem:[#allocation8 + $0x18] sm:$0xf]
        %v407 = vld [vmem:[#allocation8 + $0x1c] sm:$0xf]
        %v408 = vld [vmem:[#allocation8 + $0x20] sm:$0xf]
        %v409 = vld [vmem:[#allocation8 + $0x24] sm:$0xf]
        %v410 = vld [vmem:[#allocation8 + $0x28] sm:$0xf]
        %v411 = vld [vmem:[#allocation8 + $0x2c] sm:$0xf]
        %v412 = vld [vmem:[#allocation8 + $0x30] sm:$0xf]
        %v413 = vld [vmem:[#allocation8 + $0x34] sm:$0xf]
        %v414 = vld [vmem:[#allocation8 + $0x38] sm:$0xf]
        %v415 = vld [vmem:[#allocation8 + $0x3c] sm:$0xf]
        %v448 = vunpack.c.l.b16 %v336
        %v449 = vunpack.c.l.b16 %v337
        %v450 = vunpack.c.l.b16 %v338
        %v451 = vunpack.c.l.b16 %v339
        %v452 = vunpack.c.l.b16 %v340
        %v453 = vunpack.c.l.b16 %v341
        %v454 = vunpack.c.l.b16 %v342
        %v455 = vunpack.c.l.b16 %v343
        %v456 = vunpack.c.l.b16 %v344
        %v457 = vunpack.c.l.b16 %v345
        %v458 = vunpack.c.l.b16 %v346
        %v459 = vunpack.c.l.b16 %v347
        %v460 = vunpack.c.l.b16 %v348
        %v461 = vunpack.c.l.b16 %v349
        %v462 = vunpack.c.l.b16 %v350
        %v463 = vunpack.c.l.b16 %v351
        %v464 = vunpack.c.l.b16 %v352
        %v465 = vunpack.c.l.b16 %v353
        %v466 = vunpack.c.l.b16 %v354
        %v467 = vunpack.c.l.b16 %v355
        %v468 = vunpack.c.l.b16 %v356
        %v469 = vunpack.c.l.b16 %v357
        %v470 = vunpack.c.l.b16 %v358
        %v471 = vunpack.c.l.b16 %v359
        %v472 = vunpack.c.l.b16 %v360
        %v473 = vunpack.c.l.b16 %v361
        %v474 = vunpack.c.l.b16 %v362
        %v475 = vunpack.c.l.b16 %v363
        %v476 = vunpack.c.l.b16 %v364
        %v477 = vunpack.c.l.b16 %v365
        %v478 = vunpack.c.l.b16 %v366
        %v479 = vunpack.c.l.b16 %v367
        %v480 = vpack.c.b16 %v449, %v448
        %v481 = vpack.c.b16 %v451, %v450
        %v482 = vpack.c.b16 %v453, %v452
        %v483 = vpack.c.b16 %v455, %v454
        %v484 = vpack.c.b16 %v457, %v456
        %v485 = vpack.c.b16 %v459, %v458
        %v486 = vpack.c.b16 %v461, %v460
        %v487 = vpack.c.b16 %v463, %v462
        %v488 = vpack.c.b16 %v465, %v464
        %v489 = vpack.c.b16 %v467, %v466
        %v490 = vpack.c.b16 %v469, %v468
        %v491 = vpack.c.b16 %v471, %v470
        %v492 = vpack.c.b16 %v473, %v472
        %v493 = vpack.c.b16 %v475, %v474
        %v494 = vpack.c.b16 %v477, %v476
        %v495 = vpack.c.b16 %v479, %v478
        %v528 = vunpack.c.l.b16 %v400
        %v529 = vunpack.c.l.b16 %v401
        %v530 = vunpack.c.l.b16 %v402
        %v531 = vunpack.c.l.b16 %v403
        %v532 = vunpack.c.l.b16 %v404
        %v533 = vunpack.c.l.b16 %v405
        %v534 = vunpack.c.l.b16 %v406
        %v535 = vunpack.c.l.b16 %v407
        %v536 = vunpack.c.l.b16 %v408
        %v537 = vunpack.c.l.b16 %v409
        %v538 = vunpack.c.l.b16 %v410
        %v539 = vunpack.c.l.b16 %v411
        %v540 = vunpack.c.l.b16 %v412
        %v541 = vunpack.c.l.b16 %v413
        %v542 = vunpack.c.l.b16 %v414
        %v543 = vunpack.c.l.b16 %v415
        %v544 = vpack.c.b16 %v529, %v528
        %v545 = vpack.c.b16 %v531, %v530
        %v546 = vpack.c.b16 %v533, %v532
        %v547 = vpack.c.b16 %v535, %v534
        %v548 = vpack.c.b16 %v537, %v536
        %v549 = vpack.c.b16 %v539, %v538
        %v550 = vpack.c.b16 %v541, %v540
        %v551 = vpack.c.b16 %v543, %v542
        %560 = vmatprep.subr.bf16.mxu0 0
        %561 = vmatpush1.bf16.msra.mxu0 %v544
        %562 = vmatprep.subr.bf16.mxu0 0
        %563 = vmatpush1.bf16.msra.mxu0 %v545
        %564 = vmatprep.subr.bf16.mxu0 0
        %565 = vmatpush1.bf16.msra.mxu0 %v546
        %566 = vmatprep.subr.bf16.mxu0 0
        %567 = vmatpush1.bf16.msra.mxu0 %v547
        %568 = vmatprep.subr.bf16.mxu0 0
        %569 = vmatpush1.bf16.msra.mxu0 %v548
        %570 = vmatprep.subr.bf16.mxu0 0
        %571 = vmatpush1.bf16.msra.mxu0 %v549
        %572 = vmatprep.subr.bf16.mxu0 0
        %573 = vmatpush1.bf16.msra.mxu0 %v550
        %574 = vmatprep.subr.bf16.mxu0 0
        %575 = vmatpush1.bf16.msra.mxu0 %v551
        %576 = vmatprep.subr.bf16.mxu0 0
        %577 = vmatpush1.bf16.msra.mxu0 0
        %578 = vmatprep.subr.bf16.mxu0 0
        %579 = vmatpush1.bf16.msra.mxu0 0
        %580 = vmatprep.subr.bf16.mxu0 0
        %581 = vmatpush1.bf16.msra.mxu0 0
        %582 = vmatprep.subr.bf16.mxu0 0
        %583 = vmatpush1.bf16.msra.mxu0 0
        %584 = vmatprep.subr.bf16.mxu0 0
        %585 = vmatpush1.bf16.msra.mxu0 0
        %586 = vmatprep.subr.bf16.mxu0 0
        %587 = vmatpush1.bf16.msra.mxu0 0
        %588 = vmatprep.subr.bf16.mxu0 0
        %589 = vmatpush1.bf16.msra.mxu0 0
        %590 = vmatprep.subr.bf16.mxu0 0
        %591 = vmatpush1.bf16.msra.mxu0 0
        %592 = vmatprep.mubr.bf16.mxu0 0
        %593 = vmatmul.mubr.bf16.gmra.mrb[0].mxu0 %v480
        %v594 = vpop.f32.mrb[0].mxu0
        %v595 = vadd.f32 0.0, %v594
        %v596 = vpop.f32.mrb[0].mxu0
        %v597 = vpop.f32.mrb[0].mxu0
        %v598 = vadd.f32 0.0, %v597
        %v599 = vpop.f32.mrb[0].mxu0
        %600 = vmatprep.mubr.bf16.mxu0 0
        %601 = vmatmul.mubr.bf16.gmra.mrb[0].mxu0 %v481
        %v602 = vpop.f32.mrb[0].mxu0
        %v603 = vadd.f32 0.0, %v602
        %v604 = vpop.f32.mrb[0].mxu0
        %v605 = vpop.f32.mrb[0].mxu0
        %v606 = vadd.f32 0.0, %v605
        %v607 = vpop.f32.mrb[0].mxu0
        %608 = vmatprep.mubr.bf16.mxu0 0
        %609 = vmatmul.mubr.bf16.gmra.mrb[0].mxu0 %v482
        %v610 = vpop.f32.mrb[0].mxu0
        %v611 = vadd.f32 0.0, %v610
        %v612 = vpop.f32.mrb[0].mxu0
        %v613 = vpop.f32.mrb[0].mxu0
        %v614 = vadd.f32 0.0, %v613
        %v615 = vpop.f32.mrb[0].mxu0
        %616 = vmatprep.mubr.bf16.mxu0 0
        %617 = vmatmul.mubr.bf16.gmra.mrb[0].mxu0 %v483
        %v618 = vpop.f32.mrb[0].mxu0
        %v619 = vadd.f32 0.0, %v618
        %v620 = vpop.f32.mrb[0].mxu0
        %v621 = vpop.f32.mrb[0].mxu0
        %v622 = vadd.f32 0.0, %v621
        %v623 = vpop.f32.mrb[0].mxu0
        %624 = vmatprep.mubr.bf16.mxu0 0
        %625 = vmatmul.mubr.bf16.gmra.mrb[0].mxu0 %v484
        %v626 = vpop.f32.mrb[0].mxu0
        %v627 = vadd.f32 0.0, %v626
        %v628 = vpop.f32.mrb[0].mxu0
        %v629 = vpop.f32.mrb[0].mxu0
        %v630 = vadd.f32 0.0, %v629
        %v631 = vpop.f32.mrb[0].mxu0
        %632 = vmatprep.mubr.bf16.mxu0 0
        %633 = vmatmul.mubr.bf16.gmra.mrb[0].mxu0 %v485
        %v634 = vpop.f32.mrb[0].mxu0
        %v635 = vadd.f32 0.0, %v634
        %v636 = vpop.f32.mrb[0].mxu0
        %v637 = vpop.f32.mrb[0].mxu0
        %v638 = vadd.f32 0.0, %v637
        %v639 = vpop.f32.mrb[0].mxu0
        %640 = vmatprep.mubr.bf16.mxu0 0
        %641 = vmatmul.mubr.bf16.gmra.mrb[0].mxu0 %v486
        %v642 = vpop.f32.mrb[0].mxu0
        %v643 = vadd.f32 0.0, %v642
        %v644 = vpop.f32.mrb[0].mxu0
        %v645 = vpop.f32.mrb[0].mxu0
        %v646 = vadd.f32 0.0, %v645
        %v647 = vpop.f32.mrb[0].mxu0
        %648 = vmatprep.mubr.bf16.mxu0 0
        %649 = vmatmul.mubr.bf16.gmra.mrb[0].mxu0 %v487
        %v650 = vpop.f32.mrb[0].mxu0
        %v651 = vadd.f32 0.0, %v650
        %v652 = vpop.f32.mrb[0].mxu0
        %v653 = vpop.f32.mrb[0].mxu0
        %v654 = vadd.f32 0.0, %v653
        %v655 = vpop.f32.mrb[0].mxu0
        %656 = vmatprep.mubr.bf16.mxu0 0
        %657 = vmatmul.mubr.bf16.gmra.mrb[0].mxu0 %v488
        %v658 = vpop.f32.mrb[0].mxu0
        %v659 = vadd.f32 0.0, %v658
        %v660 = vpop.f32.mrb[0].mxu0
        %v661 = vpop.f32.mrb[0].mxu0
        %v662 = vadd.f32 0.0, %v661
        %v663 = vpop.f32.mrb[0].mxu0
        %664 = vmatprep.mubr.bf16.mxu0 0
        %665 = vmatmul.mubr.bf16.gmra.mrb[0].mxu0 %v489
        %v666 = vpop.f32.mrb[0].mxu0
        %v667 = vadd.f32 0.0, %v666
        %v668 = vpop.f32.mrb[0].mxu0
        %v669 = vpop.f32.mrb[0].mxu0
        %v670 = vadd.f32 0.0, %v669
        %v671 = vpop.f32.mrb[0].mxu0
        %672 = vmatprep.mubr.bf16.mxu0 0
        %673 = vmatmul.mubr.bf16.gmra.mrb[0].mxu0 %v490
        %v674 = vpop.f32.mrb[0].mxu0
        %v675 = vadd.f32 0.0, %v674
        %v676 = vpop.f32.mrb[0].mxu0
        %v677 = vpop.f32.mrb[0].mxu0
        %v678 = vadd.f32 0.0, %v677
        %v679 = vpop.f32.mrb[0].mxu0
        %680 = vmatprep.mubr.bf16.mxu0 0
        %681 = vmatmul.mubr.bf16.gmra.mrb[0].mxu0 %v491
        %v682 = vpop.f32.mrb[0].mxu0
        %v683 = vadd.f32 0.0, %v682
        %v684 = vpop.f32.mrb[0].mxu0
        %v685 = vpop.f32.mrb[0].mxu0
        %v686 = vadd.f32 0.0, %v685
        %v687 = vpop.f32.mrb[0].mxu0
        %688 = vmatprep.mubr.bf16.mxu0 0
        %689 = vmatmul.mubr.bf16.gmra.mrb[0].mxu0 %v492
        %v690 = vpop.f32.mrb[0].mxu0
        %v691 = vadd.f32 0.0, %v690
        %v692 = vpop.f32.mrb[0].mxu0
        %v693 = vpop.f32.mrb[0].mxu0
        %v694 = vadd.f32 0.0, %v693
        %v695 = vpop.f32.mrb[0].mxu0
        %696 = vmatprep.mubr.bf16.mxu0 0
        %697 = vmatmul.mubr.bf16.gmra.mrb[0].mxu0 %v493
        %v698 = vpop.f32.mrb[0].mxu0
        %v699 = vadd.f32 0.0, %v698
        %v700 = vpop.f32.mrb[0].mxu0
        %v701 = vpop.f32.mrb[0].mxu0
        %v702 = vadd.f32 0.0, %v701
        %v703 = vpop.f32.mrb[0].mxu0
        %704 = vmatprep.mubr.bf16.mxu0 0
        %705 = vmatmul.mubr.bf16.gmra.mrb[0].mxu0 %v494
        %v706 = vpop.f32.mrb[0].mxu0
        %v707 = vadd.f32 0.0, %v706
        %v708 = vpop.f32.mrb[0].mxu0
        %v709 = vpop.f32.mrb[0].mxu0
        %v710 = vadd.f32 0.0, %v709
        %v711 = vpop.f32.mrb[0].mxu0
        %712 = vmatprep.mubr.bf16.mxu0 0
        %713 = vmatmul.mubr.bf16.gmra.mrb[0].mxu0 %v495
        %v714 = vpop.f32.mrb[0].mxu0
        %v715 = vadd.f32 0.0, %v714
        %v716 = vpop.f32.mrb[0].mxu0
        %v717 = vpop.f32.mrb[0].mxu0
        %v718 = vadd.f32 0.0, %v717
        %v719 = vpop.f32.mrb[0].mxu0
        %720 = vdwg.mxu0
        %v721 = vpack.c.bf16 %v598, %v595
        %v722 = vpack.c.bf16 %v606, %v603
        %v723 = vpack.c.bf16 %v614, %v611
        %v724 = vpack.c.bf16 %v622, %v619
        %v725 = vpack.c.bf16 %v630, %v627
        %v726 = vpack.c.bf16 %v638, %v635
        %v727 = vpack.c.bf16 %v646, %v643
        %v728 = vpack.c.bf16 %v654, %v651
        %v729 = vpack.c.bf16 %v662, %v659
        %v730 = vpack.c.bf16 %v670, %v667
        %v731 = vpack.c.bf16 %v678, %v675
        %v732 = vpack.c.bf16 %v686, %v683
        %v733 = vpack.c.bf16 %v694, %v691
        %v734 = vpack.c.bf16 %v702, %v699
        %v735 = vpack.c.bf16 %v710, %v707
        %v736 = vpack.c.bf16 %v718, %v715
        %v769 = vunpack.c.l.b16 %v368
        %v770 = vunpack.c.h.b16 %v368
        %v771 = vunpack.c.l.b16 %v369
        %v772 = vunpack.c.h.b16 %v369
        %v773 = vunpack.c.l.b16 %v370
        %v774 = vunpack.c.h.b16 %v370
        %v775 = vunpack.c.l.b16 %v371
        %v776 = vunpack.c.h.b16 %v371
        %v777 = vunpack.c.l.b16 %v372
        %v778 = vunpack.c.h.b16 %v372
        %v779 = vunpack.c.l.b16 %v373
        %v780 = vunpack.c.h.b16 %v373
        %v781 = vunpack.c.l.b16 %v374
        %v782 = vunpack.c.h.b16 %v374
        %v783 = vunpack.c.l.b16 %v375
        %v784 = vunpack.c.h.b16 %v375
        %v785 = vunpack.c.l.b16 %v376
        %v786 = vunpack.c.h.b16 %v376
        %v787 = vunpack.c.l.b16 %v377
        %v788 = vunpack.c.h.b16 %v377
        %v789 = vunpack.c.l.b16 %v378
        %v790 = vunpack.c.h.b16 %v378
        %v791 = vunpack.c.l.b16 %v379
        %v792 = vunpack.c.h.b16 %v379
        %v793 = vunpack.c.l.b16 %v380
        %v794 = vunpack.c.h.b16 %v380
        %v795 = vunpack.c.l.b16 %v381
        %v796 = vunpack.c.h.b16 %v381
        %v797 = vunpack.c.l.b16 %v382
        %v798 = vunpack.c.h.b16 %v382
        %v799 = vunpack.c.l.b16 %v383
        %v800 = vunpack.c.h.b16 %v383
        %v801 = vunpack.c.l.b16 %v384
        %v802 = vunpack.c.h.b16 %v384
        %v803 = vunpack.c.l.b16 %v385
        %v804 = vunpack.c.h.b16 %v385
        %v805 = vunpack.c.l.b16 %v386
        %v806 = vunpack.c.h.b16 %v386
        %v807 = vunpack.c.l.b16 %v387
        %v808 = vunpack.c.h.b16 %v387
        %v809 = vunpack.c.l.b16 %v388
        %v810 = vunpack.c.h.b16 %v388
        %v811 = vunpack.c.l.b16 %v389
        %v812 = vunpack.c.h.b16 %v389
        %v813 = vunpack.c.l.b16 %v390
        %v814 = vunpack.c.h.b16 %v390
        %v815 = vunpack.c.l.b16 %v391
        %v816 = vunpack.c.h.b16 %v391
        %v817 = vunpack.c.l.b16 %v392
        %v818 = vunpack.c.h.b16 %v392
        %v819 = vunpack.c.l.b16 %v393
        %v820 = vunpack.c.h.b16 %v393
        %v821 = vunpack.c.l.b16 %v394
        %v822 = vunpack.c.h.b16 %v394
        %v823 = vunpack.c.l.b16 %v395
        %v824 = vunpack.c.h.b16 %v395
        %v825 = vunpack.c.l.b16 %v396
        %v826 = vunpack.c.h.b16 %v396
        %v827 = vunpack.c.l.b16 %v397
        %v828 = vunpack.c.h.b16 %v397
        %v829 = vunpack.c.l.b16 %v398
        %v830 = vunpack.c.h.b16 %v398
        %v831 = vunpack.c.l.b16 %v399
        %v832 = vunpack.c.h.b16 %v399
        %v833 = vpack.c.b16 %v771, %v769
        %v834 = vpack.c.b16 %v772, %v770
        %v835 = vpack.c.b16 %v775, %v773
        %v836 = vpack.c.b16 %v776, %v774
        %v837 = vpack.c.b16 %v779, %v777
        %v838 = vpack.c.b16 %v780, %v778
        %v839 = vpack.c.b16 %v783, %v781
        %v840 = vpack.c.b16 %v784, %v782
        %v841 = vpack.c.b16 %v787, %v785
        %v842 = vpack.c.b16 %v788, %v786
        %v843 = vpack.c.b16 %v791, %v789
        %v844 = vpack.c.b16 %v792, %v790
        %v845 = vpack.c.b16 %v795, %v793
        %v846 = vpack.c.b16 %v796, %v794
        %v847 = vpack.c.b16 %v799, %v797
        %v848 = vpack.c.b16 %v800, %v798
        %v849 = vpack.c.b16 %v803, %v801
        %v850 = vpack.c.b16 %v804, %v802
        %v851 = vpack.c.b16 %v807, %v805
        %v852 = vpack.c.b16 %v808, %v806
        %v853 = vpack.c.b16 %v811, %v809
        %v854 = vpack.c.b16 %v812, %v810
        %v855 = vpack.c.b16 %v815, %v813
        %v856 = vpack.c.b16 %v816, %v814
        %v857 = vpack.c.b16 %v819, %v817
        %v858 = vpack.c.b16 %v820, %v818
        %v859 = vpack.c.b16 %v823, %v821
        %v860 = vpack.c.b16 %v824, %v822
        %v861 = vpack.c.b16 %v827, %v825
        %v862 = vpack.c.b16 %v828, %v826
        %v863 = vpack.c.b16 %v831, %v829
        %v864 = vpack.c.b16 %v832, %v830
        %897 = vmatprep.subr.bf16.mxu0 0
        %898 = vmatpush1.bf16.msra.mxu0 %v721
        %899 = vmatprep.subr.bf16.mxu0 0
        %900 = vmatpush1.bf16.msra.mxu0 %v722
        %901 = vmatprep.subr.bf16.mxu0 0
        %902 = vmatpush1.bf16.msra.mxu0 %v723
        %903 = vmatprep.subr.bf16.mxu0 0
        %904 = vmatpush1.bf16.msra.mxu0 %v724
        %905 = vmatprep.subr.bf16.mxu0 0
        %906 = vmatpush1.bf16.msra.mxu0 %v725
        %907 = vmatprep.subr.bf16.mxu0 0
        %908 = vmatpush1.bf16.msra.mxu0 %v726
        %909 = vmatprep.subr.bf16.mxu0 0
        %910 = vmatpush1.bf16.msra.mxu0 %v727
        %911 = vmatprep.subr.bf16.mxu0 0
        %912 = vmatpush1.bf16.msra.mxu0 %v728
        %913 = vmatprep.subr.bf16.mxu0 0
        %914 = vmatpush1.bf16.msra.mxu0 %v729
        %915 = vmatprep.subr.bf16.mxu0 0
        %916 = vmatpush1.bf16.msra.mxu0 %v730
        %917 = vmatprep.subr.bf16.mxu0 0
        %918 = vmatpush1.bf16.msra.mxu0 %v731
        %919 = vmatprep.subr.bf16.mxu0 0
        %920 = vmatpush1.bf16.msra.mxu0 %v732
        %921 = vmatprep.subr.bf16.mxu0 0
        %922 = vmatpush1.bf16.msra.mxu0 %v733
        %923 = vmatprep.subr.bf16.mxu0 0
        %924 = vmatpush1.bf16.msra.mxu0 %v734
        %925 = vmatprep.subr.bf16.mxu0 0
        %926 = vmatpush1.bf16.msra.mxu0 %v735
        %927 = vmatprep.subr.bf16.mxu0 0
        %928 = vmatpush1.bf16.msra.mxu0 %v736
        %929 = vmatprep.mubr.bf16.mxu0 %v834
        %930 = vmatmul.mubr.bf16.gmra.mrb[0].mxu0 %v833
        %v931 = vpop.f32.mrb[0].mxu0
        %v932 = vadd.f32 0.0, %v931
        %v933 = vpop.f32.mrb[0].mxu0
        %v934 = vpop.f32.mrb[0].mxu0
        %v935 = vadd.f32 0.0, %v934
        %v936 = vpop.f32.mrb[0].mxu0
        %937 = vmatprep.mubr.bf16.mxu0 %v836
        %938 = vmatmul.mubr.bf16.gmra.mrb[0].mxu0 %v835
        %v939 = vpop.f32.mrb[0].mxu0
        %v940 = vadd.f32 0.0, %v939
        %v941 = vpop.f32.mrb[0].mxu0
        %v942 = vpop.f32.mrb[0].mxu0
        %v943 = vadd.f32 0.0, %v942
        %v944 = vpop.f32.mrb[0].mxu0
        %945 = vmatprep.mubr.bf16.mxu0 %v838
        %946 = vmatmul.mubr.bf16.gmra.mrb[0].mxu0 %v837
        %v947 = vpop.f32.mrb[0].mxu0
        %v948 = vadd.f32 0.0, %v947
        %v949 = vpop.f32.mrb[0].mxu0
        %v950 = vpop.f32.mrb[0].mxu0
        %v951 = vadd.f32 0.0, %v950
        %v952 = vpop.f32.mrb[0].mxu0
        %953 = vmatprep.mubr.bf16.mxu0 %v840
        %954 = vmatmul.mubr.bf16.gmra.mrb[0].mxu0 %v839
        %v955 = vpop.f32.mrb[0].mxu0
        %v956 = vadd.f32 0.0, %v955
        %v957 = vpop.f32.mrb[0].mxu0
        %v958 = vpop.f32.mrb[0].mxu0
        %v959 = vadd.f32 0.0, %v958
        %v960 = vpop.f32.mrb[0].mxu0
        %961 = vmatprep.mubr.bf16.mxu0 %v842
        %962 = vmatmul.mubr.bf16.gmra.mrb[0].mxu0 %v841
        %v963 = vpop.f32.mrb[0].mxu0
        %v964 = vadd.f32 0.0, %v963
        %v965 = vpop.f32.mrb[0].mxu0
        %v966 = vpop.f32.mrb[0].mxu0
        %v967 = vadd.f32 0.0, %v966
        %v968 = vpop.f32.mrb[0].mxu0
        %969 = vmatprep.mubr.bf16.mxu0 %v844
        %970 = vmatmul.mubr.bf16.gmra.mrb[0].mxu0 %v843
        %v971 = vpop.f32.mrb[0].mxu0
        %v972 = vadd.f32 0.0, %v971
        %v973 = vpop.f32.mrb[0].mxu0
        %v974 = vpop.f32.mrb[0].mxu0
        %v975 = vadd.f32 0.0, %v974
        %v976 = vpop.f32.mrb[0].mxu0
        %977 = vmatprep.mubr.bf16.mxu0 %v846
        %978 = vmatmul.mubr.bf16.gmra.mrb[0].mxu0 %v845
        %v979 = vpop.f32.mrb[0].mxu0
        %v980 = vadd.f32 0.0, %v979
        %v981 = vpop.f32.mrb[0].mxu0
        %v982 = vpop.f32.mrb[0].mxu0
        %v983 = vadd.f32 0.0, %v982
        %v984 = vpop.f32.mrb[0].mxu0
        %985 = vmatprep.mubr.bf16.mxu0 %v848
        %986 = vmatmul.mubr.bf16.gmra.mrb[0].mxu0 %v847
        %v987 = vpop.f32.mrb[0].mxu0
        %v988 = vadd.f32 0.0, %v987
        %v989 = vpop.f32.mrb[0].mxu0
        %v990 = vpop.f32.mrb[0].mxu0
        %v991 = vadd.f32 0.0, %v990
        %v992 = vpop.f32.mrb[0].mxu0
        %993 = vmatprep.mubr.bf16.mxu0 %v850
        %994 = vmatmul.mubr.bf16.gmra.mrb[0].mxu0 %v849
        %v995 = vpop.f32.mrb[0].mxu0
        %v996 = vadd.f32 0.0, %v995
        %v997 = vpop.f32.mrb[0].mxu0
        %v998 = vpop.f32.mrb[0].mxu0
        %v999 = vadd.f32 0.0, %v998
        %v1000 = vpop.f32.mrb[0].mxu0
        %1001 = vmatprep.mubr.bf16.mxu0 %v852
        %1002 = vmatmul.mubr.bf16.gmra.mrb[0].mxu0 %v851
        %v1003 = vpop.f32.mrb[0].mxu0
        %v1004 = vadd.f32 0.0, %v1003
        %v1005 = vpop.f32.mrb[0].mxu0
        %v1006 = vpop.f32.mrb[0].mxu0
        %v1007 = vadd.f32 0.0, %v1006
        %v1008 = vpop.f32.mrb[0].mxu0
        %1009 = vmatprep.mubr.bf16.mxu0 %v854
        %1010 = vmatmul.mubr.bf16.gmra.mrb[0].mxu0 %v853
        %v1011 = vpop.f32.mrb[0].mxu0
        %v1012 = vadd.f32 0.0, %v1011
        %v1013 = vpop.f32.mrb[0].mxu0
        %v1014 = vpop.f32.mrb[0].mxu0
        %v1015 = vadd.f32 0.0, %v1014
        %v1016 = vpop.f32.mrb[0].mxu0
        %1017 = vmatprep.mubr.bf16.mxu0 %v856
        %1018 = vmatmul.mubr.bf16.gmra.mrb[0].mxu0 %v855
        %v1019 = vpop.f32.mrb[0].mxu0
        %v1020 = vadd.f32 0.0, %v1019
        %v1021 = vpop.f32.mrb[0].mxu0
        %v1022 = vpop.f32.mrb[0].mxu0
        %v1023 = vadd.f32 0.0, %v1022
        %v1024 = vpop.f32.mrb[0].mxu0
        %1025 = vmatprep.mubr.bf16.mxu0 %v858
        %1026 = vmatmul.mubr.bf16.gmra.mrb[0].mxu0 %v857
        %v1027 = vpop.f32.mrb[0].mxu0
        %v1028 = vadd.f32 0.0, %v1027
        %v1029 = vpop.f32.mrb[0].mxu0
        %v1030 = vpop.f32.mrb[0].mxu0
        %v1031 = vadd.f32 0.0, %v1030
        %v1032 = vpop.f32.mrb[0].mxu0
        %1033 = vmatprep.mubr.bf16.mxu0 %v860
        %1034 = vmatmul.mubr.bf16.gmra.mrb[0].mxu0 %v859
        %v1035 = vpop.f32.mrb[0].mxu0
        %v1036 = vadd.f32 0.0, %v1035
        %v1037 = vpop.f32.mrb[0].mxu0
        %v1038 = vpop.f32.mrb[0].mxu0
        %v1039 = vadd.f32 0.0, %v1038
        %v1040 = vpop.f32.mrb[0].mxu0
        %1041 = vmatprep.mubr.bf16.mxu0 %v862
        %1042 = vmatmul.mubr.bf16.gmra.mrb[0].mxu0 %v861
        %v1043 = vpop.f32.mrb[0].mxu0
        %v1044 = vadd.f32 0.0, %v1043
        %v1045 = vpop.f32.mrb[0].mxu0
        %v1046 = vpop.f32.mrb[0].mxu0
        %v1047 = vadd.f32 0.0, %v1046
        %v1048 = vpop.f32.mrb[0].mxu0
        %1049 = vmatprep.mubr.bf16.mxu0 %v864
        %1050 = vmatmul.mubr.bf16.gmra.mrb[0].mxu0 %v863
        %v1051 = vpop.f32.mrb[0].mxu0
        %v1052 = vadd.f32 0.0, %v1051
        %v1053 = vpop.f32.mrb[0].mxu0
        %v1054 = vpop.f32.mrb[0].mxu0
        %v1055 = vadd.f32 0.0, %v1054
        %v1056 = vpop.f32.mrb[0].mxu0
        %1057 = vdwg.mxu0
        %v1058 = vpack.c.bf16 %v935, %v932
        %v1059 = vpack.c.bf16 %v943, %v940
        %v1060 = vpack.c.bf16 %v951, %v948
        %v1061 = vpack.c.bf16 %v959, %v956
        %v1062 = vpack.c.bf16 %v967, %v964
        %v1063 = vpack.c.bf16 %v975, %v972
        %v1064 = vpack.c.bf16 %v983, %v980
        %v1065 = vpack.c.bf16 %v991, %v988
        %v1066 = vpack.c.bf16 %v999, %v996
        %v1067 = vpack.c.bf16 %v1007, %v1004
        %v1068 = vpack.c.bf16 %v1015, %v1012
        %v1069 = vpack.c.bf16 %v1023, %v1020
        %v1070 = vpack.c.bf16 %v1031, %v1028
        %v1071 = vpack.c.bf16 %v1039, %v1036
        %v1072 = vpack.c.bf16 %v1047, %v1044
        %v1073 = vpack.c.bf16 %v1055, %v1052
        %s1074 = scalar_lea.vmem [#allocation8], 64
        %v1075 = vld [vmem:[%s1074] sm:$0xf]
        %v1076 = vld [vmem:[%s1074 + $0x4] sm:$0xf]
        %v1077 = vld [vmem:[%s1074 + $0x8] sm:$0xf]
        %v1078 = vld [vmem:[%s1074 + $0xc] sm:$0xf]
        %v1079 = vld [vmem:[%s1074 + $0x10] sm:$0xf]
        %v1080 = vld [vmem:[%s1074 + $0x14] sm:$0xf]
        %v1081 = vld [vmem:[%s1074 + $0x18] sm:$0xf]
        %v1082 = vld [vmem:[%s1074 + $0x1c] sm:$0xf]
        %v1083 = vld [vmem:[%s1074 + $0x20] sm:$0xf]
        %v1084 = vld [vmem:[%s1074 + $0x24] sm:$0xf]
        %v1085 = vld [vmem:[%s1074 + $0x28] sm:$0xf]
        %v1086 = vld [vmem:[%s1074 + $0x2c] sm:$0xf]
        %v1087 = vld [vmem:[%s1074 + $0x30] sm:$0xf]
        %v1088 = vld [vmem:[%s1074 + $0x34] sm:$0xf]
        %v1089 = vld [vmem:[%s1074 + $0x38] sm:$0xf]
        %v1090 = vld [vmem:[%s1074 + $0x3c] sm:$0xf]
        %v1107 = vunpack.c.l.b16 %v1075
        %v1108 = vunpack.c.l.b16 %v1076
        %v1109 = vunpack.c.l.b16 %v1077
        %v1110 = vunpack.c.l.b16 %v1078
        %v1111 = vunpack.c.l.b16 %v1079
        %v1112 = vunpack.c.l.b16 %v1080
        %v1113 = vunpack.c.l.b16 %v1081
        %v1114 = vunpack.c.l.b16 %v1082
        %v1115 = vunpack.c.l.b16 %v1083
        %v1116 = vunpack.c.l.b16 %v1084
        %v1117 = vunpack.c.l.b16 %v1085
        %v1118 = vunpack.c.l.b16 %v1086
        %v1119 = vunpack.c.l.b16 %v1087
        %v1120 = vunpack.c.l.b16 %v1088
        %v1121 = vunpack.c.l.b16 %v1089
        %v1122 = vunpack.c.l.b16 %v1090
        %v1123 = vpack.c.b16 %v1108, %v1107
        %v1124 = vpack.c.b16 %v1110, %v1109
        %v1125 = vpack.c.b16 %v1112, %v1111
        %v1126 = vpack.c.b16 %v1114, %v1113
        %v1127 = vpack.c.b16 %v1116, %v1115
        %v1128 = vpack.c.b16 %v1118, %v1117
        %v1129 = vpack.c.b16 %v1120, %v1119
        %v1130 = vpack.c.b16 %v1122, %v1121
        %1139 = vmatprep.subr.bf16.mxu0 0
        %1140 = vmatpush1.bf16.msra.mxu0 %v1123
        %1141 = vmatprep.subr.bf16.mxu0 0
        %1142 = vmatpush1.bf16.msra.mxu0 %v1124
        %1143 = vmatprep.subr.bf16.mxu0 0
        %1144 = vmatpush1.bf16.msra.mxu0 %v1125
        %1145 = vmatprep.subr.bf16.mxu0 0
        %1146 = vmatpush1.bf16.msra.mxu0 %v1126
        %1147 = vmatprep.subr.bf16.mxu0 0
        %1148 = vmatpush1.bf16.msra.mxu0 %v1127
        %1149 = vmatprep.subr.bf16.mxu0 0
        %1150 = vmatpush1.bf16.msra.mxu0 %v1128
        %1151 = vmatprep.subr.bf16.mxu0 0
        %1152 = vmatpush1.bf16.msra.mxu0 %v1129
        %1153 = vmatprep.subr.bf16.mxu0 0
        %1154 = vmatpush1.bf16.msra.mxu0 %v1130
        %1155 = vmatprep.subr.bf16.mxu0 0
        %1156 = vmatpush1.bf16.msra.mxu0 0
        %1157 = vmatprep.subr.bf16.mxu0 0
        %1158 = vmatpush1.bf16.msra.mxu0 0
        %1159 = vmatprep.subr.bf16.mxu0 0
        %1160 = vmatpush1.bf16.msra.mxu0 0
        %1161 = vmatprep.subr.bf16.mxu0 0
        %1162 = vmatpush1.bf16.msra.mxu0 0
        %1163 = vmatprep.subr.bf16.mxu0 0
        %1164 = vmatpush1.bf16.msra.mxu0 0
        %1165 = vmatprep.subr.bf16.mxu0 0
        %1166 = vmatpush1.bf16.msra.mxu0 0
        %1167 = vmatprep.subr.bf16.mxu0 0
        %1168 = vmatpush1.bf16.msra.mxu0 0
        %1169 = vmatprep.subr.bf16.mxu0 0
        %1170 = vmatpush1.bf16.msra.mxu0 0
        %1171 = vmatprep.mubr.bf16.mxu0 0
        %1172 = vmatmul.mubr.bf16.gmra.mrb[0].mxu0 %v1058
        %v1173 = vpop.f32.mrb[0].mxu0
        %v1174 = vadd.f32 0.0, %v1173
        %v1175 = vpop.f32.mrb[0].mxu0
        %v1176 = vpop.f32.mrb[0].mxu0
        %v1177 = vadd.f32 0.0, %v1176
        %v1178 = vpop.f32.mrb[0].mxu0
        %1179 = vmatprep.mubr.bf16.mxu0 0
        %1180 = vmatmul.mubr.bf16.gmra.mrb[0].mxu0 %v1059
        %v1181 = vpop.f32.mrb[0].mxu0
        %v1182 = vadd.f32 0.0, %v1181
        %v1183 = vpop.f32.mrb[0].mxu0
        %v1184 = vpop.f32.mrb[0].mxu0
        %v1185 = vadd.f32 0.0, %v1184
        %v1186 = vpop.f32.mrb[0].mxu0
        %1187 = vmatprep.mubr.bf16.mxu0 0
        %1188 = vmatmul.mubr.bf16.gmra.mrb[0].mxu0 %v1060
        %v1189 = vpop.f32.mrb[0].mxu0
        %v1190 = vadd.f32 0.0, %v1189
        %v1191 = vpop.f32.mrb[0].mxu0
        %v1192 = vpop.f32.mrb[0].mxu0
        %v1193 = vadd.f32 0.0, %v1192
        %v1194 = vpop.f32.mrb[0].mxu0
        %1195 = vmatprep.mubr.bf16.mxu0 0
        %1196 = vmatmul.mubr.bf16.gmra.mrb[0].mxu0 %v1061
        %v1197 = vpop.f32.mrb[0].mxu0
        %v1198 = vadd.f32 0.0, %v1197
        %v1199 = vpop.f32.mrb[0].mxu0
        %v1200 = vpop.f32.mrb[0].mxu0
        %v1201 = vadd.f32 0.0, %v1200
        %v1202 = vpop.f32.mrb[0].mxu0
        %1203 = vmatprep.mubr.bf16.mxu0 0
        %1204 = vmatmul.mubr.bf16.gmra.mrb[0].mxu0 %v1062
        %v1205 = vpop.f32.mrb[0].mxu0
        %v1206 = vadd.f32 0.0, %v1205
        %v1207 = vpop.f32.mrb[0].mxu0
        %v1208 = vpop.f32.mrb[0].mxu0
        %v1209 = vadd.f32 0.0, %v1208
        %v1210 = vpop.f32.mrb[0].mxu0
        %1211 = vmatprep.mubr.bf16.mxu0 0
        %1212 = vmatmul.mubr.bf16.gmra.mrb[0].mxu0 %v1063
        %v1213 = vpop.f32.mrb[0].mxu0
        %v1214 = vadd.f32 0.0, %v1213
        %v1215 = vpop.f32.mrb[0].mxu0
        %v1216 = vpop.f32.mrb[0].mxu0
        %v1217 = vadd.f32 0.0, %v1216
        %v1218 = vpop.f32.mrb[0].mxu0
        %1219 = vmatprep.mubr.bf16.mxu0 0
        %1220 = vmatmul.mubr.bf16.gmra.mrb[0].mxu0 %v1064
        %v1221 = vpop.f32.mrb[0].mxu0
        %v1222 = vadd.f32 0.0, %v1221
        %v1223 = vpop.f32.mrb[0].mxu0
        %v1224 = vpop.f32.mrb[0].mxu0
        %v1225 = vadd.f32 0.0, %v1224
        %v1226 = vpop.f32.mrb[0].mxu0
        %1227 = vmatprep.mubr.bf16.mxu0 0
        %1228 = vmatmul.mubr.bf16.gmra.mrb[0].mxu0 %v1065
        %v1229 = vpop.f32.mrb[0].mxu0
        %v1230 = vadd.f32 0.0, %v1229
        %v1231 = vpop.f32.mrb[0].mxu0
        %v1232 = vpop.f32.mrb[0].mxu0
        %v1233 = vadd.f32 0.0, %v1232
        %v1234 = vpop.f32.mrb[0].mxu0
        %1235 = vmatprep.mubr.bf16.mxu0 0
        %1236 = vmatmul.mubr.bf16.gmra.mrb[0].mxu0 %v1066
        %v1237 = vpop.f32.mrb[0].mxu0
        %v1238 = vadd.f32 0.0, %v1237
        %v1239 = vpop.f32.mrb[0].mxu0
        %v1240 = vpop.f32.mrb[0].mxu0
        %v1241 = vadd.f32 0.0, %v1240
        %v1242 = vpop.f32.mrb[0].mxu0
        %1243 = vmatprep.mubr.bf16.mxu0 0
        %1244 = vmatmul.mubr.bf16.gmra.mrb[0].mxu0 %v1067
        %v1245 = vpop.f32.mrb[0].mxu0
        %v1246 = vadd.f32 0.0, %v1245
        %v1247 = vpop.f32.mrb[0].mxu0
        %v1248 = vpop.f32.mrb[0].mxu0
        %v1249 = vadd.f32 0.0, %v1248
        %v1250 = vpop.f32.mrb[0].mxu0
        %1251 = vmatprep.mubr.bf16.mxu0 0
        %1252 = vmatmul.mubr.bf16.gmra.mrb[0].mxu0 %v1068
        %v1253 = vpop.f32.mrb[0].mxu0
        %v1254 = vadd.f32 0.0, %v1253
        %v1255 = vpop.f32.mrb[0].mxu0
        %v1256 = vpop.f32.mrb[0].mxu0
        %v1257 = vadd.f32 0.0, %v1256
        %v1258 = vpop.f32.mrb[0].mxu0
        %1259 = vmatprep.mubr.bf16.mxu0 0
        %1260 = vmatmul.mubr.bf16.gmra.mrb[0].mxu0 %v1069
        %v1261 = vpop.f32.mrb[0].mxu0
        %v1262 = vadd.f32 0.0, %v1261
        %v1263 = vpop.f32.mrb[0].mxu0
        %v1264 = vpop.f32.mrb[0].mxu0
        %v1265 = vadd.f32 0.0, %v1264
        %v1266 = vpop.f32.mrb[0].mxu0
        %1267 = vmatprep.mubr.bf16.mxu0 0
        %1268 = vmatmul.mubr.bf16.gmra.mrb[0].mxu0 %v1070
        %v1269 = vpop.f32.mrb[0].mxu0
        %v1270 = vadd.f32 0.0, %v1269
        %v1271 = vpop.f32.mrb[0].mxu0
        %v1272 = vpop.f32.mrb[0].mxu0
        %v1273 = vadd.f32 0.0, %v1272
        %v1274 = vpop.f32.mrb[0].mxu0
        %1275 = vmatprep.mubr.bf16.mxu0 0
        %1276 = vmatmul.mubr.bf16.gmra.mrb[0].mxu0 %v1071
        %v1277 = vpop.f32.mrb[0].mxu0
        %v1278 = vadd.f32 0.0, %v1277
        %v1279 = vpop.f32.mrb[0].mxu0
        %v1280 = vpop.f32.mrb[0].mxu0
        %v1281 = vadd.f32 0.0, %v1280
        %v1282 = vpop.f32.mrb[0].mxu0
        %1283 = vmatprep.mubr.bf16.mxu0 0
        %1284 = vmatmul.mubr.bf16.gmra.mrb[0].mxu0 %v1072
        %v1285 = vpop.f32.mrb[0].mxu0
        %v1286 = vadd.f32 0.0, %v1285
        %v1287 = vpop.f32.mrb[0].mxu0
        %v1288 = vpop.f32.mrb[0].mxu0
        %v1289 = vadd.f32 0.0, %v1288
        %v1290 = vpop.f32.mrb[0].mxu0
        %1291 = vmatprep.mubr.bf16.mxu0 0
        %1292 = vmatmul.mubr.bf16.gmra.mrb[0].mxu0 %v1073
        %v1293 = vpop.f32.mrb[0].mxu0
        %v1294 = vadd.f32 0.0, %v1293
        %v1295 = vpop.f32.mrb[0].mxu0
        %v1296 = vpop.f32.mrb[0].mxu0
        %v1297 = vadd.f32 0.0, %v1296
        %v1298 = vpop.f32.mrb[0].mxu0
        %1299 = vdwg.mxu0
        %v1300 = vpack.c.bf16 %v1177, %v1174
        %v1301 = vpack.c.bf16 %v1185, %v1182
        %v1302 = vpack.c.bf16 %v1193, %v1190
        %v1303 = vpack.c.bf16 %v1201, %v1198
        %v1304 = vpack.c.bf16 %v1209, %v1206
        %v1305 = vpack.c.bf16 %v1217, %v1214
        %v1306 = vpack.c.bf16 %v1225, %v1222
        %v1307 = vpack.c.bf16 %v1233, %v1230
        %v1308 = vpack.c.bf16 %v1241, %v1238
        %v1309 = vpack.c.bf16 %v1249, %v1246
        %v1310 = vpack.c.bf16 %v1257, %v1254
        %v1311 = vpack.c.bf16 %v1265, %v1262
        %v1312 = vpack.c.bf16 %v1273, %v1270
        %v1313 = vpack.c.bf16 %v1281, %v1278
        %v1314 = vpack.c.bf16 %v1289, %v1286
        %v1315 = vpack.c.bf16 %v1297, %v1294
        %1316 = vmatprep.subr.bf16.mxu0 0
        %1317 = vmatpush1.bf16.msra.mxu0 %v1300
        %1318 = vmatprep.subr.bf16.mxu0 0
        %1319 = vmatpush1.bf16.msra.mxu0 %v1301
        %1320 = vmatprep.subr.bf16.mxu0 0
        %1321 = vmatpush1.bf16.msra.mxu0 %v1302
        %1322 = vmatprep.subr.bf16.mxu0 0
        %1323 = vmatpush1.bf16.msra.mxu0 %v1303
        %1324 = vmatprep.subr.bf16.mxu0 0
        %1325 = vmatpush1.bf16.msra.mxu0 %v1304
        %1326 = vmatprep.subr.bf16.mxu0 0
        %1327 = vmatpush1.bf16.msra.mxu0 %v1305
        %1328 = vmatprep.subr.bf16.mxu0 0
        %1329 = vmatpush1.bf16.msra.mxu0 %v1306
        %1330 = vmatprep.subr.bf16.mxu0 0
        %1331 = vmatpush1.bf16.msra.mxu0 %v1307
        %1332 = vmatprep.subr.bf16.mxu0 0
        %1333 = vmatpush1.bf16.msra.mxu0 %v1308
        %1334 = vmatprep.subr.bf16.mxu0 0
        %1335 = vmatpush1.bf16.msra.mxu0 %v1309
        %1336 = vmatprep.subr.bf16.mxu0 0
        %1337 = vmatpush1.bf16.msra.mxu0 %v1310
        %1338 = vmatprep.subr.bf16.mxu0 0
        %1339 = vmatpush1.bf16.msra.mxu0 %v1311
        %1340 = vmatprep.subr.bf16.mxu0 0
        %1341 = vmatpush1.bf16.msra.mxu0 %v1312
        %1342 = vmatprep.subr.bf16.mxu0 0
        %1343 = vmatpush1.bf16.msra.mxu0 %v1313
        %1344 = vmatprep.subr.bf16.mxu0 0
        %1345 = vmatpush1.bf16.msra.mxu0 %v1314
        %1346 = vmatprep.subr.bf16.mxu0 0
        %1347 = vmatpush1.bf16.msra.mxu0 %v1315
        %1348 = vmatprep.mubr.bf16.mxu0 %v834
        %1349 = vmatmul.mubr.bf16.gmra.mrb[0].mxu0 %v833
        %v1350 = vpop.f32.mrb[0].mxu0
        %v1351 = vadd.f32 0.0, %v1350
        %v1352 = vpop.f32.mrb[0].mxu0
        %v1353 = vpop.f32.mrb[0].mxu0
        %v1354 = vadd.f32 0.0, %v1353
        %v1355 = vpop.f32.mrb[0].mxu0
        %1356 = vmatprep.mubr.bf16.mxu0 %v836
        %1357 = vmatmul.mubr.bf16.gmra.mrb[0].mxu0 %v835
        %v1358 = vpop.f32.mrb[0].mxu0
        %v1359 = vadd.f32 0.0, %v1358
        %v1360 = vpop.f32.mrb[0].mxu0
        %v1361 = vpop.f32.mrb[0].mxu0
        %v1362 = vadd.f32 0.0, %v1361
        %v1363 = vpop.f32.mrb[0].mxu0
        %1364 = vmatprep.mubr.bf16.mxu0 %v838
        %1365 = vmatmul.mubr.bf16.gmra.mrb[0].mxu0 %v837
        %v1366 = vpop.f32.mrb[0].mxu0
        %v1367 = vadd.f32 0.0, %v1366
        %v1368 = vpop.f32.mrb[0].mxu0
        %v1369 = vpop.f32.mrb[0].mxu0
        %v1370 = vadd.f32 0.0, %v1369
        %v1371 = vpop.f32.mrb[0].mxu0
        %1372 = vmatprep.mubr.bf16.mxu0 %v840
        %1373 = vmatmul.mubr.bf16.gmra.mrb[0].mxu0 %v839
        %v1374 = vpop.f32.mrb[0].mxu0
        %v1375 = vadd.f32 0.0, %v1374
        %v1376 = vpop.f32.mrb[0].mxu0
        %v1377 = vpop.f32.mrb[0].mxu0
        %v1378 = vadd.f32 0.0, %v1377
        %v1379 = vpop.f32.mrb[0].mxu0
        %1380 = vmatprep.mubr.bf16.mxu0 %v842
        %1381 = vmatmul.mubr.bf16.gmra.mrb[0].mxu0 %v841
        %v1382 = vpop.f32.mrb[0].mxu0
        %v1383 = vadd.f32 0.0, %v1382
        %v1384 = vpop.f32.mrb[0].mxu0
        %v1385 = vpop.f32.mrb[0].mxu0
        %v1386 = vadd.f32 0.0, %v1385
        %v1387 = vpop.f32.mrb[0].mxu0
        %1388 = vmatprep.mubr.bf16.mxu0 %v844
        %1389 = vmatmul.mubr.bf16.gmra.mrb[0].mxu0 %v843
        %v1390 = vpop.f32.mrb[0].mxu0
        %v1391 = vadd.f32 0.0, %v1390
        %v1392 = vpop.f32.mrb[0].mxu0
        %v1393 = vpop.f32.mrb[0].mxu0
        %v1394 = vadd.f32 0.0, %v1393
        %v1395 = vpop.f32.mrb[0].mxu0
        %1396 = vmatprep.mubr.bf16.mxu0 %v846
        %1397 = vmatmul.mubr.bf16.gmra.mrb[0].mxu0 %v845
        %v1398 = vpop.f32.mrb[0].mxu0
        %v1399 = vadd.f32 0.0, %v1398
        %v1400 = vpop.f32.mrb[0].mxu0
        %v1401 = vpop.f32.mrb[0].mxu0
        %v1402 = vadd.f32 0.0, %v1401
        %v1403 = vpop.f32.mrb[0].mxu0
        %1404 = vmatprep.mubr.bf16.mxu0 %v848
        %1405 = vmatmul.mubr.bf16.gmra.mrb[0].mxu0 %v847
        %v1406 = vpop.f32.mrb[0].mxu0
        %v1407 = vadd.f32 0.0, %v1406
        %v1408 = vpop.f32.mrb[0].mxu0
        %v1409 = vpop.f32.mrb[0].mxu0
        %v1410 = vadd.f32 0.0, %v1409
        %v1411 = vpop.f32.mrb[0].mxu0
        %1412 = vmatprep.mubr.bf16.mxu0 %v850
        %1413 = vmatmul.mubr.bf16.gmra.mrb[0].mxu0 %v849
        %v1414 = vpop.f32.mrb[0].mxu0
        %v1415 = vadd.f32 0.0, %v1414
        %v1416 = vpop.f32.mrb[0].mxu0
        %v1417 = vpop.f32.mrb[0].mxu0
        %v1418 = vadd.f32 0.0, %v1417
        %v1419 = vpop.f32.mrb[0].mxu0
        %1420 = vmatprep.mubr.bf16.mxu0 %v852
        %1421 = vmatmul.mubr.bf16.gmra.mrb[0].mxu0 %v851
        %v1422 = vpop.f32.mrb[0].mxu0
        %v1423 = vadd.f32 0.0, %v1422
        %v1424 = vpop.f32.mrb[0].mxu0
        %v1425 = vpop.f32.mrb[0].mxu0
        %v1426 = vadd.f32 0.0, %v1425
        %v1427 = vpop.f32.mrb[0].mxu0
        %1428 = vmatprep.mubr.bf16.mxu0 %v854
        %1429 = vmatmul.mubr.bf16.gmra.mrb[0].mxu0 %v853
        %v1430 = vpop.f32.mrb[0].mxu0
        %v1431 = vadd.f32 0.0, %v1430
        %v1432 = vpop.f32.mrb[0].mxu0
        %v1433 = vpop.f32.mrb[0].mxu0
        %v1434 = vadd.f32 0.0, %v1433
        %v1435 = vpop.f32.mrb[0].mxu0
        %1436 = vmatprep.mubr.bf16.mxu0 %v856
        %1437 = vmatmul.mubr.bf16.gmra.mrb[0].mxu0 %v855
        %v1438 = vpop.f32.mrb[0].mxu0
        %v1439 = vadd.f32 0.0, %v1438
        %v1440 = vpop.f32.mrb[0].mxu0
        %v1441 = vpop.f32.mrb[0].mxu0
        %v1442 = vadd.f32 0.0, %v1441
        %v1443 = vpop.f32.mrb[0].mxu0
        %1444 = vmatprep.mubr.bf16.mxu0 %v858
        %1445 = vmatmul.mubr.bf16.gmra.mrb[0].mxu0 %v857
        %v1446 = vpop.f32.mrb[0].mxu0
        %v1447 = vadd.f32 0.0, %v1446
        %v1448 = vpop.f32.mrb[0].mxu0
        %v1449 = vpop.f32.mrb[0].mxu0
        %v1450 = vadd.f32 0.0, %v1449
        %v1451 = vpop.f32.mrb[0].mxu0
        %1452 = vmatprep.mubr.bf16.mxu0 %v860
        %1453 = vmatmul.mubr.bf16.gmra.mrb[0].mxu0 %v859
        %v1454 = vpop.f32.mrb[0].mxu0
        %v1455 = vadd.f32 0.0, %v1454
        %v1456 = vpop.f32.mrb[0].mxu0
        %v1457 = vpop.f32.mrb[0].mxu0
        %v1458 = vadd.f32 0.0, %v1457
        %v1459 = vpop.f32.mrb[0].mxu0
        %1460 = vmatprep.mubr.bf16.mxu0 %v862
        %1461 = vmatmul.mubr.bf16.gmra.mrb[0].mxu0 %v861
        %v1462 = vpop.f32.mrb[0].mxu0
        %v1463 = vadd.f32 0.0, %v1462
        %v1464 = vpop.f32.mrb[0].mxu0
        %v1465 = vpop.f32.mrb[0].mxu0
        %v1466 = vadd.f32 0.0, %v1465
        %v1467 = vpop.f32.mrb[0].mxu0
        %1468 = vmatprep.mubr.bf16.mxu0 %v864
        %1469 = vmatmul.mubr.bf16.gmra.mrb[0].mxu0 %v863
        %v1470 = vpop.f32.mrb[0].mxu0
        %v1471 = vadd.f32 0.0, %v1470
        %v1472 = vpop.f32.mrb[0].mxu0
        %v1473 = vpop.f32.mrb[0].mxu0
        %v1474 = vadd.f32 0.0, %v1473
        %v1475 = vpop.f32.mrb[0].mxu0
        %1476 = vdwg.mxu0
        %v1477 = vmax.f32 %v1351, %v1354
        %v1478 = vmax.f32 %v1359, %v1362
        %v1479 = vmax.f32 %v1477, %v1478
        %v1480 = vrot.slane %v1479, 4
        %v1481 = vmax.f32 %v1479, %v1480
        %v1482 = vrot.slane %v1481, 2
        %v1483 = vmax.f32 %v1481, %v1482
        %v1484 = vrot.slane %v1483, 1
        %v1485 = vmax.f32 %v1483, %v1484
        %v1486 = vmax.f32 %v1367, %v1370
        %v1487 = vmax.f32 %v1375, %v1378
        %v1488 = vmax.f32 %v1486, %v1487
        %v1489 = vrot.slane %v1488, 4
        %v1490 = vmax.f32 %v1488, %v1489
        %v1491 = vrot.slane %v1490, 2
        %v1492 = vmax.f32 %v1490, %v1491
        %v1493 = vrot.slane %v1492, 1
        %v1494 = vmax.f32 %v1492, %v1493
        %v1495 = vmax.f32 %v1383, %v1386
        %v1496 = vmax.f32 %v1391, %v1394
        %v1497 = vmax.f32 %v1495, %v1496
        %v1498 = vrot.slane %v1497, 4
        %v1499 = vmax.f32 %v1497, %v1498
        %v1500 = vrot.slane %v1499, 2
        %v1501 = vmax.f32 %v1499, %v1500
        %v1502 = vrot.slane %v1501, 1
        %v1503 = vmax.f32 %v1501, %v1502
        %v1504 = vmax.f32 %v1399, %v1402
        %v1505 = vmax.f32 %v1407, %v1410
        %v1506 = vmax.f32 %v1504, %v1505
        %v1507 = vrot.slane %v1506, 4
        %v1508 = vmax.f32 %v1506, %v1507
        %v1509 = vrot.slane %v1508, 2
        %v1510 = vmax.f32 %v1508, %v1509
        %v1511 = vrot.slane %v1510, 1
        %v1512 = vmax.f32 %v1510, %v1511
        %v1513 = vmax.f32 %v1415, %v1418
        %v1514 = vmax.f32 %v1423, %v1426
        %v1515 = vmax.f32 %v1513, %v1514
        %v1516 = vrot.slane %v1515, 4
        %v1517 = vmax.f32 %v1515, %v1516
        %v1518 = vrot.slane %v1517, 2
        %v1519 = vmax.f32 %v1517, %v1518
        %v1520 = vrot.slane %v1519, 1
        %v1521 = vmax.f32 %v1519, %v1520
        %v1522 = vmax.f32 %v1431, %v1434
        %v1523 = vmax.f32 %v1439, %v1442
        %v1524 = vmax.f32 %v1522, %v1523
        %v1525 = vrot.slane %v1524, 4
        %v1526 = vmax.f32 %v1524, %v1525
        %v1527 = vrot.slane %v1526, 2
        %v1528 = vmax.f32 %v1526, %v1527
        %v1529 = vrot.slane %v1528, 1
        %v1530 = vmax.f32 %v1528, %v1529
        %v1531 = vmax.f32 %v1447, %v1450
        %v1532 = vmax.f32 %v1455, %v1458
        %v1533 = vmax.f32 %v1531, %v1532
        %v1534 = vrot.slane %v1533, 4
        %v1535 = vmax.f32 %v1533, %v1534
        %v1536 = vrot.slane %v1535, 2
        %v1537 = vmax.f32 %v1535, %v1536
        %v1538 = vrot.slane %v1537, 1
        %v1539 = vmax.f32 %v1537, %v1538
        %v1540 = vmax.f32 %v1463, %v1466
        %v1541 = vmax.f32 %v1471, %v1474
        %v1542 = vmax.f32 %v1540, %v1541
        %v1543 = vrot.slane %v1542, 4
        %v1544 = vmax.f32 %v1542, %v1543
        %v1545 = vrot.slane %v1544, 2
        %v1546 = vmax.f32 %v1544, %v1545
        %v1547 = vrot.slane %v1546, 1
        %v1548 = vmax.f32 %v1546, %v1547
        %vm1549 = vcmask 1040384
        %v1550 = vsel %vm1549, %v1485, %v1494
        %vm1551 = vcmask 1041408
        %v1552 = vsel %vm1551, %v1550, %v1503
        %vm1553 = vcmask 1042432
        %v1554 = vsel %vm1553, %v1552, %v1512
        %vm1555 = vcmask 1043456
        %v1556 = vsel %vm1555, %v1554, %v1521
        %vm1557 = vcmask 1044480
        %v1558 = vsel %vm1557, %v1556, %v1530
        %vm1559 = vcmask 1045504
        %v1560 = vsel %vm1559, %v1558, %v1539
        %vm1561 = vcmask 1046528
        %v1562 = vsel %vm1561, %v1560, %v1548
        %v1563 = vld [vmem:[%s3] sm:$0x1]
        %v1564 = vld [vmem:[#allocation2] sm:$0x1]
        %1566 = vset.pattern.permute.xlu0 0
        %1567 = vperm.xlu0 %1566, %v1564
        %v1568 = vpop.permute.xlu0 %1567
        %v1570 = vlaneseq
        %v1571 = vshrl.u32 %v1570, 7
        %v1572 = vsub.s32 0, %v1571
        %v1573 = vrot.slane %v1568, %v1572
        %1574 = vmatprep.subr.mxu0 0.0
        %1575 = vmatpush1.xpose.msra.mxu0 %v1562
        %1576 = vmatprep.subr.mxu0 0.0
        %1577 = vmatpush1.xpose.msra.mxu0 0.0
        %1578 = vmatprep.subr.mxu0 0.0
        %1579 = vmatpush1.xpose.msra.mxu0 0.0
        %1580 = vmatprep.subr.mxu0 0.0
        %1581 = vmatpush1.xpose.msra.mxu0 0.0
        %1582 = vmatprep.subr.mxu0 0.0
        %1583 = vmatpush1.xpose.msra.mxu0 0.0
        %1584 = vmatprep.subr.mxu0 0.0
        %1585 = vmatpush1.xpose.msra.mxu0 0.0
        %1586 = vmatprep.subr.mxu0 0.0
        %1587 = vmatpush1.xpose.msra.mxu0 0.0
        %1588 = vmatprep.subr.mxu0 0.0
        %1589 = vmatpush1.xpose.msra.mxu0 0.0
        %1590 = vmatprep.subr.mxu0 0.0
        %1591 = vmatpush1.xpose.msra.mxu0 0.0
        %1592 = vmatprep.subr.mxu0 0.0
        %1593 = vmatpush1.xpose.msra.mxu0 0.0
        %1594 = vmatprep.subr.mxu0 0.0
        %1595 = vmatpush1.xpose.msra.mxu0 0.0
        %1596 = vmatprep.subr.mxu0 0.0
        %1597 = vmatpush1.xpose.msra.mxu0 0.0
        %1598 = vmatprep.subr.mxu0 0.0
        %1599 = vmatpush1.xpose.msra.mxu0 0.0
        %1600 = vmatprep.subr.mxu0 0.0
        %1601 = vmatpush1.xpose.msra.mxu0 0.0
        %1602 = vmatprep.subr.mxu0 0.0
        %1603 = vmatpush1.xpose.msra.mxu0 0.0
        %1604 = vmatprep.subr.mxu0 0.0
        %1605 = vmatpush1.xpose.msra.mxu0 0.0
        %1606 = vmatprep.subr.mxu0 0.0
        %1607 = vmatpush1.xpose.msra.mxu0 0.0
        %1608 = vmatprep.subr.mxu0 0.0
        %1609 = vmatpush1.xpose.msra.mxu0 0.0
        %1610 = vmatprep.subr.mxu0 0.0
        %1611 = vmatpush1.xpose.msra.mxu0 0.0
        %1612 = vmatprep.subr.mxu0 0.0
        %1613 = vmatpush1.xpose.msra.mxu0 0.0
        %1614 = vmatprep.subr.mxu0 0.0
        %1615 = vmatpush1.xpose.msra.mxu0 0.0
        %1616 = vmatprep.subr.mxu0 0.0
        %1617 = vmatpush1.xpose.msra.mxu0 0.0
        %1618 = vmatprep.subr.mxu0 0.0
        %1619 = vmatpush1.xpose.msra.mxu0 0.0
        %1620 = vmatprep.subr.mxu0 0.0
        %1621 = vmatpush1.xpose.msra.mxu0 0.0
        %1622 = vmatprep.subr.mxu0 0.0
        %1623 = vmatpush1.xpose.msra.mxu0 0.0
        %1624 = vmatprep.subr.mxu0 0.0
        %1625 = vmatpush1.xpose.msra.mxu0 0.0
        %1626 = vmatprep.subr.mxu0 0.0
        %1627 = vmatpush1.xpose.msra.mxu0 0.0
        %1628 = vmatprep.subr.mxu0 0.0
        %1629 = vmatpush1.xpose.msra.mxu0 0.0
        %1630 = vmatprep.subr.mxu0 0.0
        %1631 = vmatpush1.xpose.msra.mxu0 0.0
        %1632 = vmatprep.subr.mxu0 0.0
        %1633 = vmatpush1.xpose.msra.mxu0 0.0
        %1634 = vmatprep.subr.mxu0 0.0
        %1635 = vmatpush1.xpose.msra.mxu0 0.0
        %1636 = vmatprep.subr.mxu0 0.0
        %1637 = vmatpush1.xpose.msra.mxu0 0.0
        %1638 = vmatprep.mubr.f32.mxu0 0.0
        %1639 = vmatmul.mubr.f32.gmra.mrb[0].mxu0 %v1563
        %v1640 = vpop.f32.mrb[0].mxu0
        %v1641 = vadd.f32 %v1573, %v1640
        %v1642 = vpop.f32.mrb[0].mxu0
        %1643 = vdwg.mxu0
        %vm1644 = vcmask 57344
        %1645 = vst.msk [vmem:[%s334] sm:$0x1] %vm1644, %v1641
        %v1646 = vxor.u32 %v1641, 2147483648
        %v1647 = vmul.f32 %v1646, 1.442695
        %v1648 = vpow.pop %v1647
        %v1649 = vadd.f32 %v1648, 1.0
        %v1650 = vrcp.pop %v1649
        %v1651 = vmul.f32 1.0, %v1650
        %1652 = vst.msk [vmem:[%s328] sm:$0x1] %vm1644, %v1651
        %s1653 = sand.u32 %s155, 1
        %s1654 = scalar_lea.sflag [#allocation5], %s1653
        %s1655 = sand.u32 %s155, 1
        %s1656 = scalar_lea.vmem [#allocation9], %s1655
        %s1657 = sand.u32 %s181, 1
        %s1658 = scalar_lea.sflag [#allocation11], %s1657
        %s1659 = sand.u32 %s181, 1
        %s1660 = scalar_lea.vmem [#allocation10], %s1659
        // Predicated region
        $region53: #{tpu_custom_call.1} parent=39 // pred_check
          %p1661 = pneg %p165
        $region54: #{tpu_custom_call.1} parent=39 // pred_check_branch
          %1663 = sbr.rel (%p1661) target = $region56
        $region55: #{tpu_custom_call.1} parent=39 // pred_region
          %s1665 = ssub.s32 16, 16
          %1666 = vsyncadd %s1654, %s1665
          %s1667 = smul.addr %s32, 16
          %s1668 = scalar_lea.hbm %s5, %s1667
          %s1670 = sshll.u32 %s1656, 4
          %s1671 = int_to_ptr.vmem [resolvable:$true] %s1670
          %1673 = dma.vmem_to_hbm [thread:$0]  %s1671, 16, %s1668, %s1654
        $region56: #{tpu_custom_call.1} parent=39 // pred_fallthru
          _
        // Predicated region
        $region57: #{tpu_custom_call.1} parent=39 // pred_check
          %p1674 = pneg %p191
        $region58: #{tpu_custom_call.1} parent=39 // pred_check_branch
          %1676 = sbr.rel (%p1674) target = $region60
        $region59: #{tpu_custom_call.1} parent=39 // pred_region
          %s1678 = ssub.s32 16, 16
          %1679 = vsyncadd %s1658, %s1678
          %s1680 = smul.addr %s32, 16
          %s1681 = scalar_lea.hbm %s6, %s1680
          %s1683 = sshll.u32 %s1660, 4
          %s1684 = int_to_ptr.vmem [resolvable:$true] %s1683
          %1686 = dma.vmem_to_hbm [thread:$0]  %s1684, 16, %s1681, %s1658
        $region60: #{tpu_custom_call.1} parent=39 // pred_fallthru
          _
      $region40: #{tpu_custom_call.1} parent=5 // pred_fallthru
        _
      %p1687 = scmp.le.s32.totalorder 2, %s27
      // Predicated region
      $region61: #{tpu_custom_call.1} parent=5 // pred_check
        %p1688 = pneg %p1687
      $region62: #{tpu_custom_call.1} parent=5 // pred_check_branch
        %1690 = sbr.rel (%p1688) target = $region64
      $region63: #{tpu_custom_call.1} parent=5 // pred_region
        %s1691 = ssub.s32 %s27, 2
        // Predicated region
        $region65: #{tpu_custom_call.1} parent=63 // pred_check
          %p1692 = pneg %p171
        $region66: #{tpu_custom_call.1} parent=63 // pred_check_branch
          %1694 = sbr.rel (%p1692) target = $region68
        $region67: #{tpu_custom_call.1} parent=63 // pred_region
          %s1695 = sand.u32 %s156, 1
          %s1696 = scalar_lea.sflag [#allocation5], %s1695
          %s1697 = sand.u32 %s156, 1
          %s1698 = scalar_lea.vmem [#allocation9], %s1697
          %1699 = dma.done %s1696, 16
        $region68: #{tpu_custom_call.1} parent=63 // pred_fallthru
          _
        // Predicated region
        $region69: #{tpu_custom_call.1} parent=63 // pred_check
          %p1700 = pneg %p197
        $region70: #{tpu_custom_call.1} parent=63 // pred_check_branch
          %1702 = sbr.rel (%p1700) target = $region72
        $region71: #{tpu_custom_call.1} parent=63 // pred_region
          %s1703 = sand.u32 %s182, 1
          %s1704 = scalar_lea.sflag [#allocation11], %s1703
          %s1705 = sand.u32 %s182, 1
          %s1706 = scalar_lea.vmem [#allocation10], %s1705
          %1707 = dma.done %s1704, 16
        $region72: #{tpu_custom_call.1} parent=63 // pred_fallthru
          _
      $region64: #{tpu_custom_call.1} parent=5 // pred_fallthru
        _
    $region6: #{tpu_custom_call.1} parent=1 // loop_footer
      %s31 = sadd.s32 1, %s27
    $region7: #{tpu_custom_call.1} parent=1 // loop_footer_branch
      %26 = sbr.rel target = $region3
    $region8: #{tpu_custom_call.1} parent=1 // loop_exit
      _
    %1708 = vsyncpa [#allocation4], 1
    %s1709 = scalar_lea.sflag [#allocation4], 1
    %1710 = vsyncpa %s1709, 1
    %1711 = vsyncpa [#allocation7], 1
    %s1712 = scalar_lea.sflag [#allocation7], 1
    %1713 = vsyncpa %s1712, 1
    %1714 = vsyncpa [#allocation5], 1
    %s1715 = scalar_lea.sflag [#allocation5], 1
    %1716 = vsyncpa %s1715, 1
    %1717 = vsyncpa [#allocation11], 1
    %s1718 = scalar_lea.sflag [#allocation11], 1
    %1719 = vsyncpa %s1718, 1

</llo_original>
